<compile_context>
chip_gen: v7x
topology: tpu7x:2x2x1
jax: 0.10.0
libtpu: 0.0.40
codegen_flags: <defaults>
</compile_context>

<pallas_src>
import functools

import jax
import jax.numpy as jnp
from jax.experimental import pallas as pl
from jax.experimental.pallas import tpu as pltpu

# ----------------------------- config ---------------------------------------
B = 4              # batch (number of utterances)
T = 256            # frames per utterance
E = 16             # phoneme embedding size
ES = 8             # speaker embedding size
H = 32             # hidden size of predictor MLP
F_TRUE = 2 * E + 4 + ES   # 44 real feature lanes
F_PAD = 64         # feature lanes (bf16), padded from 44
AUX = 8            # f32 sidecar lanes: 0=f0, 1=voiced mask, 2=speaker correction
TM = 256           # rows per kernel tile
VOWEL_VOCAB = 10
CONSONANT_VOCAB = 8
N_SPEAKERS = 4


# ----------------------------- Pallas kernel --------------------------------
def _model_kernel(feat_ref, aux_ref, w_ref, b_ref, wh_ref, bh_ref, out_ref):
    """Per tile: predictor MLP -> (output1, output2) in lanes 0/1, f0 correction,
    fused masked-L1 partial sums.  Writes one [1,1,128] partial per tile:
    lane0 = sum|out1-f0c| (voiced), lane1 = sum|out2-f0c| (voiced), lane2 = #voiced."""
    feat = feat_ref[...]                                              # [TM, F_PAD] bf16
    h = jnp.dot(feat, w_ref[...], preferred_element_type=jnp.float32) + b_ref[...]
    h = jnp.maximum(h, 0.0)                                           # [TM, H] f32
    o = jnp.dot(h, wh_ref[...], preferred_element_type=jnp.float32) + bh_ref[...]
    # o: [TM, 128]; only lanes 0 (output1) and 1 (output2) are meaningful.

    aux = aux_ref[...]                                                # [TM, AUX] f32
    f0 = aux[:, 0:1]
    mask = aux[:, 1:2]                                                # voiced (0/1)
    corr = aux[:, 2:3]                                                # output_correction[speaker]
    # f0_correction: f0[voiced] -= output_correction[speaker_id]
    f0c = f0 - mask * corr                                            # [TM, 1]

    # Fused reduction: one sublane reduce produces both masked L1 sums and the
    # voiced count, packed into lanes 0/1/2 of the per-tile partial row.
    lane = jax.lax.broadcasted_iota(jnp.int32, (1, 128), 1)
    d = jnp.abs(o - f0c) * mask                                       # [TM, 128]
    vals = jnp.where(lane < 2, d, 0.0) + jnp.where(lane == 2, mask, 0.0)
    out_ref[...] = jnp.sum(vals, axis=0, keepdims=True)[None]         # [1,1,128]


@functools.partial(jax.jit, static_argnames=("training",))
def model_forward_pallas(feat, aux, w, b, wh, bh, training=True):
    n_pad = feat.shape[0]
    num_tiles = n_pad // TM

    partials = pl.pallas_call(
        _model_kernel,
        out_shape=jax.ShapeDtypeStruct((num_tiles, 1, 128), jnp.float32),
        grid_spec=pltpu.PrefetchScalarGridSpec(
            num_scalar_prefetch=0,
            grid=(num_tiles,),
            in_specs=[
                pl.BlockSpec((TM, F_PAD), lambda i: (i, 0)),   # bf16 features
                pl.BlockSpec((TM, AUX), lambda i: (i, 0)),     # f32 f0/mask/corr sidecar
                pl.BlockSpec((F_PAD, H), lambda i: (0, 0)),    # W (bf16, resident)
                pl.BlockSpec((1, H), lambda i: (0, 0)),        # b
                pl.BlockSpec((H, 128), lambda i: (0, 0)),      # head weights
                pl.BlockSpec((1, 128), lambda i: (0, 0)),      # head bias
            ],
            out_specs=pl.BlockSpec((1, 1, 128), lambda i: (i, 0, 0)),
        ),
        compiler_params=pltpu.CompilerParams(
            dimension_semantics=("parallel",)),                # megacore on v7x
    )(feat, aux, w, b, wh, bh)

    sums = jnp.sum(partials, axis=(0, 1))                     # [128]
    sum1, sum2, weight = sums[0], sums[1], sums[2]
    # Assumption (as in the PyTorch module): at least one voiced frame, else NaN.
    loss1 = sum1 / weight        # F.l1_loss(..., 'mean') over masked frames
    loss2 = sum2 / weight
    loss = loss1 + loss2
    if training:
        losses = dict(loss=loss, loss1=loss1, loss2=loss2)
    else:
        losses = {k: (v, weight) for k, v in
                  dict(loss=loss, loss1=loss1, loss2=loss2).items()}
    # TODO(synk): `report(losses, self)` is a training-framework side effect; no Pallas equivalent.
    return loss, losses


# ----------------------------- JAX glue (predictor setup) -------------------
def init_params(key):
    ks = jax.random.split(key, 7)
    w = 0.1 * jax.random.normal(ks[3], (F_PAD, H), jnp.float32)
    # Zero W rows for padding lanes >= F_TRUE (review correctness note).
    w = jnp.where(jnp.arange(F_PAD)[:, None] < F_TRUE, w, 0.0)
    wh = jnp.zeros((H, 128), jnp.float32)
    wh = wh.at[:, 0].set(0.1 * jax.random.normal(ks[5], (H,), jnp.float32))
    wh = wh.at[:, 1].set(0.1 * jax.random.normal(ks[6], (H,), jnp.float32))
    bh = jnp.zeros((1, 128), jnp.float32).at[0, 0].set(5.0).at[0, 1].set(5.0)
    return {
        "vowel_emb": 0.1 * jax.random.normal(ks[0], (VOWEL_VOCAB, E), jnp.float32),
        "consonant_emb": 0.1 * jax.random.normal(ks[1], (CONSONANT_VOCAB, E), jnp.float32),
        "speaker_emb": 0.1 * jax.random.normal(ks[2], (N_SPEAKERS, ES), jnp.float32),
        "w": w.astype(jnp.bfloat16),
        "b": 0.01 * jax.random.normal(ks[4], (1, H), jnp.float32),
        "w_heads": wh,
        "b_heads": bh,
        # output_correction (would normally come from f0_statistics_path)
        "output_correction": jnp.array([5.0, 5.2, 4.8, 5.1], jnp.float32),
    }


def build_inputs(params, vowel, consonant, sa, ea, sap, eap, f0, voiced, speaker_id):
    """Embedding/speaker gathers (glue) producing:
      feat [N_pad, F_PAD] bf16 : predictor input features (44 real lanes + zero pad)
      aux  [N_pad, AUX]   f32  : lane 0 = f0, lane 1 = voiced mask, lane 2 = correction
    Rows are in torch.cat order ([B, T] flattened); row padding keeps mask = 0 so
    padded rows contribute nothing to the masked sums."""
    b, t = vowel.shape
    n = b * t
    v = params["vowel_emb"][vowel.reshape(-1)]                        # [N, E]
    c = params["consonant_emb"][consonant.reshape(-1)]                # [N, E]
    acc = jnp.stack([sa, ea, sap, eap], axis=-1).reshape(n, 4).astype(jnp.float32)
    spk = jnp.repeat(params["speaker_emb"][speaker_id], t, axis=0)    # [N, ES]
    feat = jnp.concatenate([v, c, acc, spk], axis=-1)                 # [N, F_TRUE]
    feat = jnp.pad(feat, ((0, 0), (0, F_PAD - feat.shape[1])))

    corr = jnp.repeat(params["output_correction"][speaker_id], t)     # [N]
    aux = jnp.stack([f0.reshape(-1).astype(jnp.float32),
                     voiced.astype(jnp.float32).reshape(-1),
                     corr.astype(jnp.float32)], axis=-1)              # [N, 3]
    aux = jnp.pad(aux, ((0, 0), (0, AUX - aux.shape[1])))

    n_pad = pl.cdiv(n, TM) * TM
    rp = n_pad - n
    feat = jnp.pad(feat, ((0, rp), (0, 0))).astype(jnp.bfloat16)
    aux = jnp.pad(aux, ((0, rp), (0, 0))).astype(jnp.float32)
    return feat, aux


def reference_forward(feat, aux, w, b, wh, bh):
    h = jnp.maximum(jnp.dot(feat, w, preferred_element_type=jnp.float32) + b, 0.0)
    o = jnp.dot(h, wh, preferred_element_type=jnp.float32) + bh
    out1, out2 = o[:, 0:1], o[:, 1:2]
    f0, mask, corr = aux[:, 0:1], aux[:, 1:2], aux[:, 2:3]
    f0c = f0 - mask * corr
    wsum = jnp.sum(mask)
    loss1 = jnp.sum(jnp.abs(out1 - f0c) * mask) / wsum
    loss2 = jnp.sum(jnp.abs(out2 - f0c) * mask) / wsum
    return loss1 + loss2


# ----------------------------- main ------------------------------------------
if __name__ == "__main__":
    key = jax.random.PRNGKey(0)
    kp, k1, k2, k3, k4, k5, k6, k7, k8, k9 = jax.random.split(key, 10)
    params = init_params(kp)

    # Synthetic inputs (lists of equal-length per-utterance tensors -> [B, T])
    vowel = jax.random.randint(k1, (B, T), 0, VOWEL_VOCAB, jnp.int32)
    consonant = jax.random.randint(k2, (B, T), 0, CONSONANT_VOCAB, jnp.int32)
    start_accent = jax.random.randint(k3, (B, T), 0, 2, jnp.int32)
    end_accent = jax.random.randint(k4, (B, T), 0, 2, jnp.int32)
    start_accent_phrase = jax.random.randint(k5, (B, T), 0, 2, jnp.int32)
    end_accent_phrase = jax.random.randint(k6, (B, T), 0, 2, jnp.int32)
    f0 = 5.0 + jax.random.normal(k7, (B, T), jnp.float32)
    voiced = jax.random.uniform(k8, (B, T)) > 0.3
    speaker_id = jax.random.randint(k9, (B,), 0, N_SPEAKERS, jnp.int32)

    feat, aux = build_inputs(
        params, vowel, consonant, start_accent, end_accent,
        start_accent_phrase, end_accent_phrase, f0, voiced, speaker_id)

    loss, losses = model_forward_pallas(
        feat, aux, params["w"], params["b"], params["w_heads"], params["b_heads"],
        training=True)
    loss = jax.block_until_ready(loss)

    loss_ref = reference_forward(
        feat, aux, params["w"], params["b"], params["w_heads"], params["b_heads"])
    assert jnp.allclose(loss, loss_ref, rtol=1e-4, atol=1e-4), (loss, loss_ref)
    print("KERNEL_OK")
</pallas_src>

<mosaic_0001>
module attributes {stable_mosaic.version = 11 : i64} {
  func.func @_model_kernel(%arg0: i32, %arg1: memref<256x64xbf16, #tpu.memory_space<vmem>>, %arg2: memref<256x8xf32, #tpu.memory_space<vmem>>, %arg3: memref<64x32xbf16, #tpu.memory_space<vmem>>, %arg4: memref<1x32xf32, #tpu.memory_space<vmem>>, %arg5: memref<32x128xf32, #tpu.memory_space<vmem>>, %arg6: memref<1x128xf32, #tpu.memory_space<vmem>>, %arg7: memref<1x1x128xf32, #tpu.memory_space<vmem>>) attributes {dimension_semantics = [#tpu.dimension_semantics<parallel>], iteration_bounds = array<i64: 4>, scalar_prefetch = 0 : i64, scratch_operands = 0 : i64, tpu.core_type = #tpu.core_type<tc>, window_params = [{transform_indices = @transform_0, window_bounds = array<i64: 256, 64>}, {transform_indices = @transform_1, window_bounds = array<i64: 256, 8>}, {pipeline_mode = #tpu.pipeline_mode<synchronous>, transform_indices = @transform_2, window_bounds = array<i64: 64, 32>}, {pipeline_mode = #tpu.pipeline_mode<synchronous>, transform_indices = @transform_3, window_bounds = array<i64: 1, 32>}, {pipeline_mode = #tpu.pipeline_mode<synchronous>, transform_indices = @transform_4, window_bounds = array<i64: 32, 128>}, {pipeline_mode = #tpu.pipeline_mode<synchronous>, transform_indices = @transform_5, window_bounds = array<i64: 1, 128>}, {transform_indices = @transform_6, window_bounds = array<i64: 1, 1, 128>}]} {
    %c0 = arith.constant 0 : index
    %c0_0 = arith.constant 0 : index
    %0 = vector.load %arg1[%c0, %c0_0] : memref<256x64xbf16, #tpu.memory_space<vmem>>, vector<256x64xbf16>
    %c0_1 = arith.constant 0 : index
    %c0_2 = arith.constant 0 : index
    %1 = vector.load %arg3[%c0_1, %c0_2] : memref<64x32xbf16, #tpu.memory_space<vmem>>, vector<64x32xbf16>
    %cst = arith.constant dense<0.000000e+00> : vector<256x32xf32>
    %2 = tpu.matmul %0, %1, %cst {dimension_numbers = #tpu.dot_dimension_numbers<[1], [0], [0], [1], [0, 0, 1, 1], [], []>} : vector<256x64xbf16>, vector<64x32xbf16>, vector<256x32xf32> -> vector<256x32xf32>
    %c0_3 = arith.constant 0 : index
    %c0_4 = arith.constant 0 : index
    %3 = vector.load %arg4[%c0_3, %c0_4] : memref<1x32xf32, #tpu.memory_space<vmem>>, vector<1x32xf32>
    %4 = vector.broadcast %3 : vector<1x32xf32> to vector<256x32xf32>
    %5 = arith.addf %2, %4 : vector<256x32xf32>
    %cst_5 = arith.constant 0.000000e+00 : f32
    %6 = vector.broadcast %cst_5 : f32 to vector<256x32xf32>
    %7 = arith.maximumf %5, %6 : vector<256x32xf32>
    %c0_6 = arith.constant 0 : index
    %c0_7 = arith.constant 0 : index
    %8 = vector.load %arg5[%c0_6, %c0_7] : memref<32x128xf32, #tpu.memory_space<vmem>>, vector<32x128xf32>
    %cst_8 = arith.constant dense<0.000000e+00> : vector<256x128xf32>
    %9 = tpu.matmul %7, %8, %cst_8 {dimension_numbers = #tpu.dot_dimension_numbers<[1], [0], [0], [1], [0, 0, 1, 1], [], []>} : vector<256x32xf32>, vector<32x128xf32>, vector<256x128xf32> -> vector<256x128xf32>
    %c0_9 = arith.constant 0 : index
    %c0_10 = arith.constant 0 : index
    %10 = vector.load %arg6[%c0_9, %c0_10] : memref<1x128xf32, #tpu.memory_space<vmem>>, vector<1x128xf32>
    %11 = vector.broadcast %10 : vector<1x128xf32> to vector<256x128xf32>
    %12 = arith.addf %9, %11 : vector<256x128xf32>
    %c0_11 = arith.constant 0 : index
    %c0_12 = arith.constant 0 : index
    %13 = vector.load %arg2[%c0_11, %c0_12] : memref<256x8xf32, #tpu.memory_space<vmem>>, vector<256x8xf32>
    %14 = vector.extract_strided_slice %13 {offsets = [0, 0], sizes = [256, 1], strides = [1, 1]} : vector<256x8xf32> to vector<256x1xf32>
    %15 = vector.extract_strided_slice %13 {offsets = [0, 1], sizes = [256, 1], strides = [1, 1]} : vector<256x8xf32> to vector<256x1xf32>
    %16 = vector.extract_strided_slice %13 {offsets = [0, 2], sizes = [256, 1], strides = [1, 1]} : vector<256x8xf32> to vector<256x1xf32>
    %17 = arith.mulf %15, %16 : vector<256x1xf32>
    %18 = arith.subf %14, %17 : vector<256x1xf32>
    %19 = tpu.iota {dimensions = array<i32: 1>} : vector<1x128xi32>
    %20 = vector.broadcast %18 : vector<256x1xf32> to vector<256x128xf32>
    %21 = arith.subf %12, %20 : vector<256x128xf32>
    %22 = math.absf %21 : vector<256x128xf32>
    %23 = vector.broadcast %15 : vector<256x1xf32> to vector<256x128xf32>
    %24 = arith.mulf %22, %23 : vector<256x128xf32>
    %c2_i32 = arith.constant 2 : i32
    %25 = vector.broadcast %c2_i32 : i32 to vector<1x128xi32>
    %26 = arith.cmpi slt, %19, %25 : vector<1x128xi32>
    %cst_13 = arith.constant 0.000000e+00 : f32
    %27 = vector.shape_cast %26 : vector<1x128xi1> to vector<1x128xi1>
    %28 = vector.broadcast %27 : vector<1x128xi1> to vector<256x128xi1>
    %29 = vector.broadcast %cst_13 : f32 to vector<256x128xf32>
    %30 = arith.select %28, %24, %29 : vector<256x128xi1>, vector<256x128xf32>
    %c2_i32_14 = arith.constant 2 : i32
    %31 = vector.broadcast %c2_i32_14 : i32 to vector<1x128xi32>
    %32 = arith.cmpi eq, %19, %31 : vector<1x128xi32>
    %cst_15 = arith.constant 0.000000e+00 : f32
    %33 = vector.shape_cast %32 : vector<1x128xi1> to vector<1x128xi1>
    %34 = vector.broadcast %33 : vector<1x128xi1> to vector<256x128xi1>
    %35 = vector.shape_cast %15 : vector<256x1xf32> to vector<256x1xf32>
    %36 = vector.broadcast %35 : vector<256x1xf32> to vector<256x128xf32>
    %37 = vector.broadcast %cst_15 : f32 to vector<256x128xf32>
    %38 = arith.select %34, %36, %37 : vector<256x128xi1>, vector<256x128xf32>
    %39 = arith.addf %30, %38 : vector<256x128xf32>
    %cst_16 = arith.constant dense<0.000000e+00> : vector<128xf32>
    %40 = vector.multi_reduction <add>, %39, %cst_16 [0] : vector<256x128xf32> to vector<128xf32>
    %41 = vector.shape_cast %40 : vector<128xf32> to vector<1x128xf32>
    %42 = vector.shape_cast %41 : vector<1x128xf32> to vector<1x1x128xf32>
    %c0_17 = arith.constant 0 : index
    %c0_18 = arith.constant 0 : index
    %c0_19 = arith.constant 0 : index
    %43 = vector.load %arg7[%c0_17, %c0_18, %c0_19] : memref<1x1x128xf32, #tpu.memory_space<vmem>>, vector<1x1x128xf32>
    tpu.vector_store %arg7[%c0_17, %c0_18, %c0_19], %42 {strides = array<i32>} : memref<1x1x128xf32, #tpu.memory_space<vmem>>, vector<1x1x128xf32>,
    return
  }
  func.func @transform_0(%arg0: i32) -> (i32, i32) {
    %c0_i32 = arith.constant 0 : i32
    %c0_i32_0 = arith.constant 0 : i32
    return %arg0, %c0_i32 : i32, i32
  }
  func.func @transform_1(%arg0: i32) -> (i32, i32) {
    %c0_i32 = arith.constant 0 : i32
    %c0_i32_0 = arith.constant 0 : i32
    return %arg0, %c0_i32 : i32, i32
  }
  func.func @transform_2(%arg0: i32) -> (i32, i32) {
    %c0_i32 = arith.constant 0 : i32
    %c0_i32_0 = arith.constant 0 : i32
    %c0_i32_1 = arith.constant 0 : i32
    return %c0_i32, %c0_i32_0 : i32, i32
  }
  func.func @transform_3(%arg0: i32) -> (i32, i32) {
    %c0_i32 = arith.constant 0 : i32
    %c0_i32_0 = arith.constant 0 : i32
    %c0_i32_1 = arith.constant 0 : i32
    return %c0_i32, %c0_i32_0 : i32, i32
  }
  func.func @transform_4(%arg0: i32) -> (i32, i32) {
    %c0_i32 = arith.constant 0 : i32
    %c0_i32_0 = arith.constant 0 : i32
    %c0_i32_1 = arith.constant 0 : i32
    return %c0_i32, %c0_i32_0 : i32, i32
  }
  func.func @transform_5(%arg0: i32) -> (i32, i32) {
    %c0_i32 = arith.constant 0 : i32
    %c0_i32_0 = arith.constant 0 : i32
    %c0_i32_1 = arith.constant 0 : i32
    return %c0_i32, %c0_i32_0 : i32, i32
  }
  func.func @transform_6(%arg0: i32) -> (i32, i32, i32) {
    %c0_i32 = arith.constant 0 : i32
    %c0_i32_0 = arith.constant 0 : i32
    %c0_i32_1 = arith.constant 0 : i32
    return %arg0, %c0_i32, %c0_i32_0 : i32, i32, i32
  }
}

</mosaic_0001>

<llo_original>
// kernel: model_forward_pallas.1
$region0: #{model_forward_pallas.1}
  #allocation0 [shape = 'u32[]', space=smem, size = 0x4, offset = 0x4, fixed_abs, tag = 'smem constant byte address 0x4 - core index']
  #allocation1 [shape = 'u32[144,128]{1,0:T(1,128)}', space=vmem, size = 0x12000, scoped, tag = 'internal scratch']
  %s0 = inlined_call_operand.vmem [shape: bf16[1024,64], index: 0, kind: input, shape index: {}]
  %s1 = inlined_call_operand.vmem [shape: f32[1024,8], index: 1, kind: input, shape index: {}]
  %s2 = inlined_call_operand.vmem [shape: bf16[64,32], index: 2, kind: input, shape index: {}]
  %s3 = inlined_call_operand.vmem [shape: f32[1,32], index: 3, kind: input, shape index: {}]
  %s4 = inlined_call_operand.vmem [shape: f32[32,128], index: 4, kind: input, shape index: {}]
  %s5 = inlined_call_operand.vmem [shape: f32[1,128], index: 5, kind: input, shape index: {}]
  %s6 = inlined_call_operand.vmem [shape: f32[4,1,128], index: 6, kind: output, shape index: {}]
  %s7 = sld [smem:[#allocation0]]
  $region57: #{model_forward_pallas.1} parent=0
    _
  %s9 = ssub.s32 1, %s7
  %s10 = scalar_select 0, %s9, %s7
  loop: start=0, step=1, limit=6
  $region2: #{model_forward_pallas.1} parent=0 // loop_pre_header
    _
  $region3: #{model_forward_pallas.1} parent=0 // loop_header
    %s12 = sphi 0, %s16
    %p13 = scmp.ge.s32.totalorder %s12, 6
    %s22 = sphi 0, %s24
    %s25 = sphi 0, %s22
    %s26 = sphi 0, %s25
    %s42 = sphi 0, %s26
    %s48 = sphi 0, %s50
    %s51 = sphi 0, %s48
    %s52 = sphi 0, %s51
    %s68 = sphi 0, %s52
    %s72 = sphi 0, %s72
    %s74 = sphi 0, %s72
    %s75 = sphi 0, %s74
    %s89 = sphi 0, %s75
    %s93 = sphi 0, %s93
    %s95 = sphi 0, %s93
    %s96 = sphi 0, %s95
    %s110 = sphi 0, %s96
    %s114 = sphi 0, %s114
    %s116 = sphi 0, %s114
    %s117 = sphi 0, %s116
    %s131 = sphi 0, %s117
    %s135 = sphi 0, %s135
    %s137 = sphi 0, %s135
    %s138 = sphi 0, %s137
    %s152 = sphi 0, %s138
    %s158 = sphi 0, %s160
    %s161 = sphi 0, %s158
    %s162 = sphi 0, %s161
    %s178 = sphi 0, %s162
  $region4: #{model_forward_pallas.1} parent=0 // loop_header_branch
    %15 = sbr.rel (%p13) target = $region8
  $region5: #{model_forward_pallas.1} parent=0 // loop_body
    %s17 = ssub.s32 %s12, 1
    %s18 = ssub.s32 %s12, 2
    %s19 = sadd.s32 %s12, 1
    %s20 = ssub.s32 %s12, %s19
    %p21 = scmp.eq.s32.totalorder %s20, 0
    %s23 = sadd.s32 %s22, 1
    %s24 = scalar_select %p21, %s22, %s23
    %p27 = pneg %p21
    %p28 = scmp.eq.s32.totalorder %s12, 3
    %p29 = por %p27, %p28
    %p30 = scmp.ne.s32.totalorder %s22, %s25
    %p31 = scmp.eq.s32.totalorder %s12, 0
    %p32 = por %p30, %p31
    %p33 = scmp.ne.s32.totalorder %s22, %s25
    %p34 = scmp.eq.s32.totalorder %s17, 3
    %p35 = por %p33, %p34
    %p36 = scmp.ne.s32.totalorder %s25, %s26
    %p37 = scmp.eq.s32.totalorder %s17, 0
    %p38 = por %p36, %p37
    %p39 = scmp.ne.s32.totalorder %s25, %s26
    %p40 = scmp.eq.s32.totalorder %s18, 3
    %p41 = por %p39, %p40
    %p43 = scmp.ne.s32.totalorder %s26, %s42
    %p44 = scmp.eq.s32.totalorder %s18, 0
    %p45 = por %p43, %p44
    %s46 = ssub.s32 %s12, %s19
    %p47 = scmp.eq.s32.totalorder %s46, 0
    %s49 = sadd.s32 %s48, 1
    %s50 = scalar_select %p47, %s48, %s49
    %p53 = pneg %p47
    %p54 = scmp.eq.s32.totalorder %s12, 3
    %p55 = por %p53, %p54
    %p56 = scmp.ne.s32.totalorder %s48, %s51
    %p57 = scmp.eq.s32.totalorder %s12, 0
    %p58 = por %p56, %p57
    %p59 = scmp.ne.s32.totalorder %s48, %s51
    %p60 = scmp.eq.s32.totalorder %s17, 3
    %p61 = por %p59, %p60
    %p62 = scmp.ne.s32.totalorder %s51, %s52
    %p63 = scmp.eq.s32.totalorder %s17, 0
    %p64 = por %p62, %p63
    %p65 = scmp.ne.s32.totalorder %s51, %s52
    %p66 = scmp.eq.s32.totalorder %s18, 3
    %p67 = por %p65, %p66
    %p69 = scmp.ne.s32.totalorder %s52, %s68
    %p70 = scmp.eq.s32.totalorder %s18, 0
    %p71 = por %p69, %p70
    %s73 = sadd.s32 %s72, 1
    %p76 = scmp.eq.s32.totalorder %s12, 3
    %p77 = scmp.ne.s32.totalorder %s72, %s74
    %p78 = scmp.eq.s32.totalorder %s12, 0
    %p79 = por %p77, %p78
    %p80 = scmp.ne.s32.totalorder %s72, %s74
    %p81 = scmp.eq.s32.totalorder %s17, 3
    %p82 = por %p80, %p81
    %p83 = scmp.ne.s32.totalorder %s74, %s75
    %p84 = scmp.eq.s32.totalorder %s17, 0
    %p85 = por %p83, %p84
    %p86 = scmp.ne.s32.totalorder %s74, %s75
    %p87 = scmp.eq.s32.totalorder %s18, 3
    %p88 = por %p86, %p87
    %p90 = scmp.ne.s32.totalorder %s75, %s89
    %p91 = scmp.eq.s32.totalorder %s18, 0
    %p92 = por %p90, %p91
    %s94 = sadd.s32 %s93, 1
    %p97 = scmp.eq.s32.totalorder %s12, 3
    %p98 = scmp.ne.s32.totalorder %s93, %s95
    %p99 = scmp.eq.s32.totalorder %s12, 0
    %p100 = por %p98, %p99
    %p101 = scmp.ne.s32.totalorder %s93, %s95
    %p102 = scmp.eq.s32.totalorder %s17, 3
    %p103 = por %p101, %p102
    %p104 = scmp.ne.s32.totalorder %s95, %s96
    %p105 = scmp.eq.s32.totalorder %s17, 0
    %p106 = por %p104, %p105
    %p107 = scmp.ne.s32.totalorder %s95, %s96
    %p108 = scmp.eq.s32.totalorder %s18, 3
    %p109 = por %p107, %p108
    %p111 = scmp.ne.s32.totalorder %s96, %s110
    %p112 = scmp.eq.s32.totalorder %s18, 0
    %p113 = por %p111, %p112
    %s115 = sadd.s32 %s114, 1
    %p118 = scmp.eq.s32.totalorder %s12, 3
    %p119 = scmp.ne.s32.totalorder %s114, %s116
    %p120 = scmp.eq.s32.totalorder %s12, 0
    %p121 = por %p119, %p120
    %p122 = scmp.ne.s32.totalorder %s114, %s116
    %p123 = scmp.eq.s32.totalorder %s17, 3
    %p124 = por %p122, %p123
    %p125 = scmp.ne.s32.totalorder %s116, %s117
    %p126 = scmp.eq.s32.totalorder %s17, 0
    %p127 = por %p125, %p126
    %p128 = scmp.ne.s32.totalorder %s116, %s117
    %p129 = scmp.eq.s32.totalorder %s18, 3
    %p130 = por %p128, %p129
    %p132 = scmp.ne.s32.totalorder %s117, %s131
    %p133 = scmp.eq.s32.totalorder %s18, 0
    %p134 = por %p132, %p133
    %s136 = sadd.s32 %s135, 1
    %p139 = scmp.eq.s32.totalorder %s12, 3
    %p140 = scmp.ne.s32.totalorder %s135, %s137
    %p141 = scmp.eq.s32.totalorder %s12, 0
    %p142 = por %p140, %p141
    %p143 = scmp.ne.s32.totalorder %s135, %s137
    %p144 = scmp.eq.s32.totalorder %s17, 3
    %p145 = por %p143, %p144
    %p146 = scmp.ne.s32.totalorder %s137, %s138
    %p147 = scmp.eq.s32.totalorder %s17, 0
    %p148 = por %p146, %p147
    %p149 = scmp.ne.s32.totalorder %s137, %s138
    %p150 = scmp.eq.s32.totalorder %s18, 3
    %p151 = por %p149, %p150
    %p153 = scmp.ne.s32.totalorder %s138, %s152
    %p154 = scmp.eq.s32.totalorder %s18, 0
    %p155 = por %p153, %p154
    %s156 = ssub.s32 %s12, %s19
    %p157 = scmp.eq.s32.totalorder %s156, 0
    %s159 = sadd.s32 %s158, 1
    %s160 = scalar_select %p157, %s158, %s159
    %p163 = pneg %p157
    %p164 = scmp.eq.s32.totalorder %s12, 3
    %p165 = por %p163, %p164
    %p166 = scmp.ne.s32.totalorder %s158, %s161
    %p167 = scmp.eq.s32.totalorder %s12, 0
    %p168 = por %p166, %p167
    %p169 = scmp.ne.s32.totalorder %s158, %s161
    %p170 = scmp.eq.s32.totalorder %s17, 3
    %p171 = por %p169, %p170
    %p172 = scmp.ne.s32.totalorder %s161, %s162
    %p173 = scmp.eq.s32.totalorder %s17, 0
    %p174 = por %p172, %p173
    %p175 = scmp.ne.s32.totalorder %s161, %s162
    %p176 = scmp.eq.s32.totalorder %s18, 3
    %p177 = por %p175, %p176
    %p179 = scmp.ne.s32.totalorder %s162, %s178
    %p180 = scmp.eq.s32.totalorder %s18, 0
    %p181 = por %p179, %p180
    %p182 = scmp.le.s32.totalorder 1, %s12
    %p183 = scmp.lt.s32.totalorder %s12, 5
    %p184 = pnand %p182, %p183
    %p185 = pneg %p184
    // Predicated region
    $region9: #{model_forward_pallas.1} parent=5 // pred_check
      _
    $region10: #{model_forward_pallas.1} parent=5 // pred_check_branch
      %187 = sbr.rel (%p184) target = $region12
    $region11: #{model_forward_pallas.1} parent=5 // pred_region
      %s188 = ssub.s32 %s12, 1
      // Predicated region
      $region13: #{model_forward_pallas.1} parent=11 // pred_check
        %p189 = pneg %p85
      $region14: #{model_forward_pallas.1} parent=11 // pred_check_branch
        %191 = sbr.rel (%p189) target = $region16
      $region15: #{model_forward_pallas.1} parent=11 // pred_region
        _
      $region16: #{model_forward_pallas.1} parent=11 // pred_fallthru
        _
      // Predicated region
      $region17: #{model_forward_pallas.1} parent=11 // pred_check
        %p192 = pneg %p106
      $region18: #{model_forward_pallas.1} parent=11 // pred_check_branch
        %194 = sbr.rel (%p192) target = $region20
      $region19: #{model_forward_pallas.1} parent=11 // pred_region
        _
      $region20: #{model_forward_pallas.1} parent=11 // pred_fallthru
        _
      // Predicated region
      $region21: #{model_forward_pallas.1} parent=11 // pred_check
        %p195 = pneg %p127
      $region22: #{model_forward_pallas.1} parent=11 // pred_check_branch
        %197 = sbr.rel (%p195) target = $region24
      $region23: #{model_forward_pallas.1} parent=11 // pred_region
        _
      $region24: #{model_forward_pallas.1} parent=11 // pred_fallthru
        _
      // Predicated region
      $region25: #{model_forward_pallas.1} parent=11 // pred_check
        %p198 = pneg %p148
      $region26: #{model_forward_pallas.1} parent=11 // pred_check_branch
        %200 = sbr.rel (%p198) target = $region28
      $region27: #{model_forward_pallas.1} parent=11 // pred_region
        _
      $region28: #{model_forward_pallas.1} parent=11 // pred_fallthru
        _
    $region12: #{model_forward_pallas.1} parent=5 // pred_fallthru
      _
    %p201 = scmp.lt.s32.totalorder %s12, 4
    // Predicated region
    $region29: #{model_forward_pallas.1} parent=5 // pred_check
      %p202 = pneg %p201
    $region30: #{model_forward_pallas.1} parent=5 // pred_check_branch
      %204 = sbr.rel (%p202) target = $region32
    $region31: #{model_forward_pallas.1} parent=5 // pred_region
      // Predicated region
      $region33: #{model_forward_pallas.1} parent=31 // pred_check
        %p205 = pneg %p32
      $region34: #{model_forward_pallas.1} parent=31 // pred_check_branch
        %207 = sbr.rel (%p205) target = $region36
      $region35: #{model_forward_pallas.1} parent=31 // pred_region
        %s208 = smul.u32 32, %s12
        %p209 = scmp.lt.s32.totalorder %s208, 127
        %s210 = scalar_select %p209, %s208, 127
        %s211 = smul.addr %s210, 4
        %s212 = scalar_lea.vmem %s0, %s211
        %s213 = smul.u32 32, %s12
      $region36: #{model_forward_pallas.1} parent=31 // pred_fallthru
        _
      // Predicated region
      $region37: #{model_forward_pallas.1} parent=31 // pred_check
        %p214 = pneg %p58
      $region38: #{model_forward_pallas.1} parent=31 // pred_check_branch
        %216 = sbr.rel (%p214) target = $region40
      $region39: #{model_forward_pallas.1} parent=31 // pred_region
        %s217 = smul.u32 32, %s12
        %p218 = scmp.lt.s32.totalorder %s217, 127
        %s219 = scalar_select %p218, %s217, 127
        %s220 = smul.addr %s219, 8
        %s221 = scalar_lea.vmem %s1, %s220
        %s222 = smul.u32 32, %s12
      $region40: #{model_forward_pallas.1} parent=31 // pred_fallthru
        _
    $region32: #{model_forward_pallas.1} parent=5 // pred_fallthru
      _
    %p223 = scmp.le.s32.totalorder 1, %s12
    %p224 = scmp.lt.s32.totalorder %s12, 5
    %p225 = pnand %p223, %p224
    %p226 = pneg %p225
    // Predicated region
    $region41: #{model_forward_pallas.1} parent=5 // pred_check
      _
    $region42: #{model_forward_pallas.1} parent=5 // pred_check_branch
      %228 = sbr.rel (%p225) target = $region44
    $region43: #{model_forward_pallas.1} parent=5 // pred_region
      %s229 = ssub.s32 %s12, 1
      %s230 = smul.u32 32, %s17
      %p231 = scmp.lt.s32.totalorder %s230, 127
      %s232 = scalar_select %p231, %s230, 127
      %s233 = smul.addr %s232, 4
      %s234 = scalar_lea.vmem %s0, %s233
      %p235 = pneg %p38
      %p236 = pneg %p35
      %s237 = smul.u32 32, %s17
      %p238 = scmp.lt.s32.totalorder %s237, 127
      %s239 = scalar_select %p238, %s237, 127
      %s240 = smul.addr %s239, 8
      %s241 = scalar_lea.vmem %s1, %s240
      %p242 = pneg %p64
      %p243 = pneg %p61
      %p244 = pneg %p85
      %p245 = pneg %p82
      %p246 = pneg %p106
      %p247 = pneg %p103
      %p248 = pneg %p127
      %p249 = pneg %p124
      %p250 = pneg %p148
      %p251 = pneg %p145
      %p252 = pneg %p174
      %p253 = pneg %p171
      %p254 = scmp.lt.s32.totalorder %s17, 3
      %s255 = scalar_select %p254, %s17, 3
      %s256 = scalar_lea.vmem %s6, %s255
      %s257 = smul.u32 32, %s17
      %p258 = scmp.lt.s32.totalorder %s257, 127
      %s259 = scalar_select %p258, %s257, 127
      %s260 = smul.addr %s259, 4
      %s261 = scalar_lea.vmem %s0, %s260
      %s262 = smul.u32 32, %s17
      %s263 = smul.u32 32, %s17
      %p264 = scmp.lt.s32.totalorder %s263, 127
      %s265 = scalar_select %p264, %s263, 127
      %s266 = smul.addr %s265, 8
      %s267 = scalar_lea.vmem %s1, %s266
      %s268 = smul.u32 32, %s17
      %p269 = scmp.lt.s32.totalorder %s17, 3
      %s270 = scalar_select %p269, %s17, 3
      %s271 = scalar_lea.vmem %s6, %s270
      %v273 = vld [vmem:[%s261] sm:$0xf]
      %v274 = vld [vmem:[%s261 + $0x4] sm:$0xf]
      %v275 = vld [vmem:[%s261 + $0x8] sm:$0xf]
      %v276 = vld [vmem:[%s261 + $0xc] sm:$0xf]
      %v277 = vld [vmem:[%s261 + $0x10] sm:$0xf]
      %v278 = vld [vmem:[%s261 + $0x14] sm:$0xf]
      %v279 = vld [vmem:[%s261 + $0x18] sm:$0xf]
      %v280 = vld [vmem:[%s261 + $0x1c] sm:$0xf]
      %v281 = vld [vmem:[%s261 + $0x20] sm:$0xf]
      %v282 = vld [vmem:[%s261 + $0x24] sm:$0xf]
      %v283 = vld [vmem:[%s261 + $0x28] sm:$0xf]
      %v284 = vld [vmem:[%s261 + $0x2c] sm:$0xf]
      %v285 = vld [vmem:[%s261 + $0x30] sm:$0xf]
      %v286 = vld [vmem:[%s261 + $0x34] sm:$0xf]
      %v287 = vld [vmem:[%s261 + $0x38] sm:$0xf]
      %v288 = vld [vmem:[%s261 + $0x3c] sm:$0xf]
      %v289 = vld [vmem:[%s261 + $0x40] sm:$0xf]
      %v290 = vld [vmem:[%s261 + $0x44] sm:$0xf]
      %v291 = vld [vmem:[%s261 + $0x48] sm:$0xf]
      %v292 = vld [vmem:[%s261 + $0x4c] sm:$0xf]
      %v293 = vld [vmem:[%s261 + $0x50] sm:$0xf]
      %v294 = vld [vmem:[%s261 + $0x54] sm:$0xf]
      %v295 = vld [vmem:[%s261 + $0x58] sm:$0xf]
      %v296 = vld [vmem:[%s261 + $0x5c] sm:$0xf]
      %v297 = vld [vmem:[%s261 + $0x60] sm:$0xf]
      %v298 = vld [vmem:[%s261 + $0x64] sm:$0xf]
      %v299 = vld [vmem:[%s261 + $0x68] sm:$0xf]
      %v300 = vld [vmem:[%s261 + $0x6c] sm:$0xf]
      %v301 = vld [vmem:[%s261 + $0x70] sm:$0xf]
      %v302 = vld [vmem:[%s261 + $0x74] sm:$0xf]
      %v303 = vld [vmem:[%s261 + $0x78] sm:$0xf]
      %v304 = vld [vmem:[%s261 + $0x7c] sm:$0xf]
      %v305 = vld [vmem:[%s2] sm:$0xf]
      %v306 = vld [vmem:[%s2 + $0x4] sm:$0xf]
      %v307 = vld [vmem:[%s2 + $0x8] sm:$0xf]
      %v308 = vld [vmem:[%s2 + $0xc] sm:$0xf]
      %v309 = vld [vmem:[%s2 + $0x10] sm:$0xf]
      %v310 = vld [vmem:[%s2 + $0x14] sm:$0xf]
      %v311 = vld [vmem:[%s2 + $0x18] sm:$0xf]
      %v312 = vld [vmem:[%s2 + $0x1c] sm:$0xf]
      %v313 = vld [vmem:[%s3] sm:$0x1]
      %v315 = vlaneseq
      %v316 = vshrl.u32 %v315, 7
      %v317 = vsub.s32 0, %v316
      %v318 = vrot.slane %v313, %v317
      %v352 = vunpack.c.l.b16 %v273
      %v353 = vunpack.c.l.b16 %v274
      %v354 = vunpack.c.l.b16 %v275
      %v355 = vunpack.c.l.b16 %v276
      %v356 = vunpack.c.l.b16 %v277
      %v357 = vunpack.c.l.b16 %v278
      %v358 = vunpack.c.l.b16 %v279
      %v359 = vunpack.c.l.b16 %v280
      %v360 = vunpack.c.l.b16 %v281
      %v361 = vunpack.c.l.b16 %v282
      %v362 = vunpack.c.l.b16 %v283
      %v363 = vunpack.c.l.b16 %v284
      %v364 = vunpack.c.l.b16 %v285
      %v365 = vunpack.c.l.b16 %v286
      %v366 = vunpack.c.l.b16 %v287
      %v367 = vunpack.c.l.b16 %v288
      %v368 = vunpack.c.l.b16 %v289
      %v369 = vunpack.c.l.b16 %v290
      %v370 = vunpack.c.l.b16 %v291
      %v371 = vunpack.c.l.b16 %v292
      %v372 = vunpack.c.l.b16 %v293
      %v373 = vunpack.c.l.b16 %v294
      %v374 = vunpack.c.l.b16 %v295
      %v375 = vunpack.c.l.b16 %v296
      %v376 = vunpack.c.l.b16 %v297
      %v377 = vunpack.c.l.b16 %v298
      %v378 = vunpack.c.l.b16 %v299
      %v379 = vunpack.c.l.b16 %v300
      %v380 = vunpack.c.l.b16 %v301
      %v381 = vunpack.c.l.b16 %v302
      %v382 = vunpack.c.l.b16 %v303
      %v383 = vunpack.c.l.b16 %v304
      %v384 = vpack.c.b16 %v353, %v352
      %v385 = vpack.c.b16 %v355, %v354
      %v386 = vpack.c.b16 %v357, %v356
      %v387 = vpack.c.b16 %v359, %v358
      %v388 = vpack.c.b16 %v361, %v360
      %v389 = vpack.c.b16 %v363, %v362
      %v390 = vpack.c.b16 %v365, %v364
      %v391 = vpack.c.b16 %v367, %v366
      %v392 = vpack.c.b16 %v369, %v368
      %v393 = vpack.c.b16 %v371, %v370
      %v394 = vpack.c.b16 %v373, %v372
      %v395 = vpack.c.b16 %v375, %v374
      %v396 = vpack.c.b16 %v377, %v376
      %v397 = vpack.c.b16 %v379, %v378
      %v398 = vpack.c.b16 %v381, %v380
      %v399 = vpack.c.b16 %v383, %v382
      %v408 = vunpack.c.l.b16 %v305
      %v409 = vunpack.c.l.b16 %v306
      %v410 = vunpack.c.l.b16 %v307
      %v411 = vunpack.c.l.b16 %v308
      %v412 = vunpack.c.l.b16 %v309
      %v413 = vunpack.c.l.b16 %v310
      %v414 = vunpack.c.l.b16 %v311
      %v415 = vunpack.c.l.b16 %v312
      %v416 = vpack.c.b16 %v409, %v408
      %v417 = vpack.c.b16 %v411, %v410
      %v418 = vpack.c.b16 %v413, %v412
      %v419 = vpack.c.b16 %v415, %v414
      %vm424 = vcmask 523264
      %v426 = vsel %vm424, %v384, 0
      %v429 = vsel %vm424, %v385, 0
      %v432 = vsel %vm424, %v386, 0
      %v435 = vsel %vm424, %v387, 0
      %v438 = vsel %vm424, %v388, 0
      %v441 = vsel %vm424, %v389, 0
      %v444 = vsel %vm424, %v390, 0
      %v447 = vsel %vm424, %v391, 0
      %v450 = vsel %vm424, %v392, 0
      %v453 = vsel %vm424, %v393, 0
      %v456 = vsel %vm424, %v394, 0
      %v459 = vsel %vm424, %v395, 0
      %v462 = vsel %vm424, %v396, 0
      %v465 = vsel %vm424, %v397, 0
      %v468 = vsel %vm424, %v398, 0
      %v471 = vsel %vm424, %v399, 0
      %473 = vmatprep.subr.bf16.mxu0 0
      %474 = vmatpush1.bf16.msra.mxu0 %v416
      %475 = vmatprep.subr.bf16.mxu0 0
      %476 = vmatpush1.bf16.msra.mxu0 %v417
      %477 = vmatprep.subr.bf16.mxu0 0
      %478 = vmatpush1.bf16.msra.mxu0 %v418
      %479 = vmatprep.subr.bf16.mxu0 0
      %480 = vmatpush1.bf16.msra.mxu0 %v419
      %481 = vmatprep.subr.bf16.mxu0 0
      %482 = vmatpush1.bf16.msra.mxu0 0
      %483 = vmatprep.subr.bf16.mxu0 0
      %484 = vmatpush1.bf16.msra.mxu0 0
      %485 = vmatprep.subr.bf16.mxu0 0
      %486 = vmatpush1.bf16.msra.mxu0 0
      %487 = vmatprep.subr.bf16.mxu0 0
      %488 = vmatpush1.bf16.msra.mxu0 0
      %489 = vmatprep.subr.bf16.mxu0 0
      %490 = vmatpush1.bf16.msra.mxu0 0
      %491 = vmatprep.subr.bf16.mxu0 0
      %492 = vmatpush1.bf16.msra.mxu0 0
      %493 = vmatprep.subr.bf16.mxu0 0
      %494 = vmatpush1.bf16.msra.mxu0 0
      %495 = vmatprep.subr.bf16.mxu0 0
      %496 = vmatpush1.bf16.msra.mxu0 0
      %497 = vmatprep.subr.bf16.mxu0 0
      %498 = vmatpush1.bf16.msra.mxu0 0
      %499 = vmatprep.subr.bf16.mxu0 0
      %500 = vmatpush1.bf16.msra.mxu0 0
      %501 = vmatprep.subr.bf16.mxu0 0
      %502 = vmatpush1.bf16.msra.mxu0 0
      %503 = vmatprep.subr.bf16.mxu0 0
      %504 = vmatpush1.bf16.msra.mxu0 0
      %505 = vmatprep.mubr.bf16.mxu0 0
      %506 = vmatmul.mubr.bf16.gmra.mrb[0].mxu0 %v426
      %v507 = vpop.f32.mrb[0].mxu0
      %v508 = vadd.f32 %v318, %v507
      %v509 = vpop.f32.mrb[0].mxu0
      %v510 = vpop.f32.mrb[0].mxu0
      %v511 = vadd.f32 %v318, %v510
      %v512 = vpop.f32.mrb[0].mxu0
      %513 = vmatprep.mubr.bf16.mxu0 0
      %514 = vmatmul.mubr.bf16.gmra.mrb[0].mxu0 %v429
      %v515 = vpop.f32.mrb[0].mxu0
      %v516 = vadd.f32 %v318, %v515
      %v517 = vpop.f32.mrb[0].mxu0
      %v518 = vpop.f32.mrb[0].mxu0
      %v519 = vadd.f32 %v318, %v518
      %v520 = vpop.f32.mrb[0].mxu0
      %521 = vmatprep.mubr.bf16.mxu0 0
      %522 = vmatmul.mubr.bf16.gmra.mrb[0].mxu0 %v432
      %v523 = vpop.f32.mrb[0].mxu0
      %v524 = vadd.f32 %v318, %v523
      %v525 = vpop.f32.mrb[0].mxu0
      %v526 = vpop.f32.mrb[0].mxu0
      %v527 = vadd.f32 %v318, %v526
      %v528 = vpop.f32.mrb[0].mxu0
      %529 = vmatprep.mubr.bf16.mxu0 0
      %530 = vmatmul.mubr.bf16.gmra.mrb[0].mxu0 %v435
      %v531 = vpop.f32.mrb[0].mxu0
      %v532 = vadd.f32 %v318, %v531
      %v533 = vpop.f32.mrb[0].mxu0
      %v534 = vpop.f32.mrb[0].mxu0
      %v535 = vadd.f32 %v318, %v534
      %v536 = vpop.f32.mrb[0].mxu0
      %537 = vmatprep.mubr.bf16.mxu0 0
      %538 = vmatmul.mubr.bf16.gmra.mrb[0].mxu0 %v438
      %v539 = vpop.f32.mrb[0].mxu0
      %v540 = vadd.f32 %v318, %v539
      %v541 = vpop.f32.mrb[0].mxu0
      %v542 = vpop.f32.mrb[0].mxu0
      %v543 = vadd.f32 %v318, %v542
      %v544 = vpop.f32.mrb[0].mxu0
      %545 = vmatprep.mubr.bf16.mxu0 0
      %546 = vmatmul.mubr.bf16.gmra.mrb[0].mxu0 %v441
      %v547 = vpop.f32.mrb[0].mxu0
      %v548 = vadd.f32 %v318, %v547
      %v549 = vpop.f32.mrb[0].mxu0
      %v550 = vpop.f32.mrb[0].mxu0
      %v551 = vadd.f32 %v318, %v550
      %v552 = vpop.f32.mrb[0].mxu0
      %553 = vmatprep.mubr.bf16.mxu0 0
      %554 = vmatmul.mubr.bf16.gmra.mrb[0].mxu0 %v444
      %v555 = vpop.f32.mrb[0].mxu0
      %v556 = vadd.f32 %v318, %v555
      %v557 = vpop.f32.mrb[0].mxu0
      %v558 = vpop.f32.mrb[0].mxu0
      %v559 = vadd.f32 %v318, %v558
      %v560 = vpop.f32.mrb[0].mxu0
      %561 = vmatprep.mubr.bf16.mxu0 0
      %562 = vmatmul.mubr.bf16.gmra.mrb[0].mxu0 %v447
      %v563 = vpop.f32.mrb[0].mxu0
      %v564 = vadd.f32 %v318, %v563
      %v565 = vpop.f32.mrb[0].mxu0
      %v566 = vpop.f32.mrb[0].mxu0
      %v567 = vadd.f32 %v318, %v566
      %v568 = vpop.f32.mrb[0].mxu0
      %569 = vmatprep.mubr.bf16.mxu0 0
      %570 = vmatmul.mubr.bf16.gmra.mrb[0].mxu0 %v450
      %v571 = vpop.f32.mrb[0].mxu0
      %v572 = vadd.f32 %v318, %v571
      %v573 = vpop.f32.mrb[0].mxu0
      %v574 = vpop.f32.mrb[0].mxu0
      %v575 = vadd.f32 %v318, %v574
      %v576 = vpop.f32.mrb[0].mxu0
      %577 = vmatprep.mubr.bf16.mxu0 0
      %578 = vmatmul.mubr.bf16.gmra.mrb[0].mxu0 %v453
      %v579 = vpop.f32.mrb[0].mxu0
      %v580 = vadd.f32 %v318, %v579
      %v581 = vpop.f32.mrb[0].mxu0
      %v582 = vpop.f32.mrb[0].mxu0
      %v583 = vadd.f32 %v318, %v582
      %v584 = vpop.f32.mrb[0].mxu0
      %585 = vmatprep.mubr.bf16.mxu0 0
      %586 = vmatmul.mubr.bf16.gmra.mrb[0].mxu0 %v456
      %v587 = vpop.f32.mrb[0].mxu0
      %v588 = vadd.f32 %v318, %v587
      %v589 = vpop.f32.mrb[0].mxu0
      %v590 = vpop.f32.mrb[0].mxu0
      %v591 = vadd.f32 %v318, %v590
      %v592 = vpop.f32.mrb[0].mxu0
      %593 = vmatprep.mubr.bf16.mxu0 0
      %594 = vmatmul.mubr.bf16.gmra.mrb[0].mxu0 %v459
      %v595 = vpop.f32.mrb[0].mxu0
      %v596 = vadd.f32 %v318, %v595
      %v597 = vpop.f32.mrb[0].mxu0
      %v598 = vpop.f32.mrb[0].mxu0
      %v599 = vadd.f32 %v318, %v598
      %v600 = vpop.f32.mrb[0].mxu0
      %601 = vmatprep.mubr.bf16.mxu0 0
      %602 = vmatmul.mubr.bf16.gmra.mrb[0].mxu0 %v462
      %v603 = vpop.f32.mrb[0].mxu0
      %v604 = vadd.f32 %v318, %v603
      %v605 = vpop.f32.mrb[0].mxu0
      %v606 = vpop.f32.mrb[0].mxu0
      %v607 = vadd.f32 %v318, %v606
      %v608 = vpop.f32.mrb[0].mxu0
      %609 = vmatprep.mubr.bf16.mxu0 0
      %610 = vmatmul.mubr.bf16.gmra.mrb[0].mxu0 %v465
      %v611 = vpop.f32.mrb[0].mxu0
      %v612 = vadd.f32 %v318, %v611
      %v613 = vpop.f32.mrb[0].mxu0
      %v614 = vpop.f32.mrb[0].mxu0
      %v615 = vadd.f32 %v318, %v614
      %v616 = vpop.f32.mrb[0].mxu0
      %617 = vmatprep.mubr.bf16.mxu0 0
      %618 = vmatmul.mubr.bf16.gmra.mrb[0].mxu0 %v468
      %v619 = vpop.f32.mrb[0].mxu0
      %v620 = vadd.f32 %v318, %v619
      %v621 = vpop.f32.mrb[0].mxu0
      %v622 = vpop.f32.mrb[0].mxu0
      %v623 = vadd.f32 %v318, %v622
      %v624 = vpop.f32.mrb[0].mxu0
      %625 = vmatprep.mubr.bf16.mxu0 0
      %626 = vmatmul.mubr.bf16.gmra.mrb[0].mxu0 %v471
      %v627 = vpop.f32.mrb[0].mxu0
      %v628 = vadd.f32 %v318, %v627
      %v629 = vpop.f32.mrb[0].mxu0
      %v630 = vpop.f32.mrb[0].mxu0
      %v631 = vadd.f32 %v318, %v630
      %v632 = vpop.f32.mrb[0].mxu0
      %633 = vdwg.mxu0
      %v634 = vmax.f32 %v508, 0.0
      %v635 = vmax.f32 %v511, 0.0
      %v636 = vmax.f32 %v516, 0.0
      %v637 = vmax.f32 %v519, 0.0
      %v638 = vmax.f32 %v524, 0.0
      %v639 = vmax.f32 %v527, 0.0
      %v640 = vmax.f32 %v532, 0.0
      %v641 = vmax.f32 %v535, 0.0
      %v642 = vmax.f32 %v540, 0.0
      %v643 = vmax.f32 %v543, 0.0
      %v644 = vmax.f32 %v548, 0.0
      %v645 = vmax.f32 %v551, 0.0
      %v646 = vmax.f32 %v556, 0.0
      %v647 = vmax.f32 %v559, 0.0
      %v648 = vmax.f32 %v564, 0.0
      %v649 = vmax.f32 %v567, 0.0
      %v650 = vmax.f32 %v572, 0.0
      %v651 = vmax.f32 %v575, 0.0
      %v652 = vmax.f32 %v580, 0.0
      %v653 = vmax.f32 %v583, 0.0
      %v654 = vmax.f32 %v588, 0.0
      %v655 = vmax.f32 %v591, 0.0
      %v656 = vmax.f32 %v596, 0.0
      %v657 = vmax.f32 %v599, 0.0
      %v658 = vmax.f32 %v604, 0.0
      %v659 = vmax.f32 %v607, 0.0
      %v660 = vmax.f32 %v612, 0.0
      %v661 = vmax.f32 %v615, 0.0
      %v662 = vmax.f32 %v620, 0.0
      %v663 = vmax.f32 %v623, 0.0
      %v664 = vmax.f32 %v628, 0.0
      %v665 = vmax.f32 %v631, 0.0
      %v666 = vld [vmem:[%s4] sm:$0xff]
      %v667 = vld [vmem:[%s4 + $0x8] sm:$0xff]
      %v668 = vld [vmem:[%s4 + $0x10] sm:$0xff]
      %v669 = vld [vmem:[%s4 + $0x18] sm:$0xff]
      %v670 = vld [vmem:[%s5] sm:$0x1]
      %v672 = vlaneseq
      %v673 = vshrl.u32 %v672, 7
      %v674 = vsub.s32 0, %v673
      %v675 = vrot.slane %v670, %v674
      %vm677 = vcmask 261120
      %v679 = vsel %vm677, %v634, 0
      %v682 = vsel %vm677, %v635, 0
      %v685 = vsel %vm677, %v636, 0
      %v688 = vsel %vm677, %v637, 0
      %v691 = vsel %vm677, %v638, 0
      %v694 = vsel %vm677, %v639, 0
      %v697 = vsel %vm677, %v640, 0
      %v700 = vsel %vm677, %v641, 0
      %v703 = vsel %vm677, %v642, 0
      %v706 = vsel %vm677, %v643, 0
      %v709 = vsel %vm677, %v644, 0
      %v712 = vsel %vm677, %v645, 0
      %v715 = vsel %vm677, %v646, 0
      %v718 = vsel %vm677, %v647, 0
      %v721 = vsel %vm677, %v648, 0
      %v724 = vsel %vm677, %v649, 0
      %v727 = vsel %vm677, %v650, 0
      %v730 = vsel %vm677, %v651, 0
      %v733 = vsel %vm677, %v652, 0
      %v736 = vsel %vm677, %v653, 0
      %v739 = vsel %vm677, %v654, 0
      %v742 = vsel %vm677, %v655, 0
      %v745 = vsel %vm677, %v656, 0
      %v748 = vsel %vm677, %v657, 0
      %v751 = vsel %vm677, %v658, 0
      %v754 = vsel %vm677, %v659, 0
      %v757 = vsel %vm677, %v660, 0
      %v760 = vsel %vm677, %v661, 0
      %v763 = vsel %vm677, %v662, 0
      %v766 = vsel %vm677, %v663, 0
      %v769 = vsel %vm677, %v664, 0
      %v772 = vsel %vm677, %v665, 0
      %774 = vmatprep.subr.mxu0 0.0
      %775 = vmatpush1.msra.mxu0 %v666
      %776 = vmatprep.subr.mxu0 0.0
      %777 = vmatpush1.msra.mxu0 %v667
      %778 = vmatprep.subr.mxu0 0.0
      %779 = vmatpush1.msra.mxu0 %v668
      %780 = vmatprep.subr.mxu0 0.0
      %781 = vmatpush1.msra.mxu0 %v669
      %782 = vmatprep.subr.mxu0 0.0
      %783 = vmatpush1.msra.mxu0 0.0
      %784 = vmatprep.subr.mxu0 0.0
      %785 = vmatpush1.msra.mxu0 0.0
      %786 = vmatprep.subr.mxu0 0.0
      %787 = vmatpush1.msra.mxu0 0.0
      %788 = vmatprep.subr.mxu0 0.0
      %789 = vmatpush1.msra.mxu0 0.0
      %790 = vmatprep.subr.mxu0 0.0
      %791 = vmatpush1.msra.mxu0 0.0
      %792 = vmatprep.subr.mxu0 0.0
      %793 = vmatpush1.msra.mxu0 0.0
      %794 = vmatprep.subr.mxu0 0.0
      %795 = vmatpush1.msra.mxu0 0.0
      %796 = vmatprep.subr.mxu0 0.0
      %797 = vmatpush1.msra.mxu0 0.0
      %798 = vmatprep.subr.mxu0 0.0
      %799 = vmatpush1.msra.mxu0 0.0
      %800 = vmatprep.subr.mxu0 0.0
      %801 = vmatpush1.msra.mxu0 0.0
      %802 = vmatprep.subr.mxu0 0.0
      %803 = vmatpush1.msra.mxu0 0.0
      %804 = vmatprep.subr.mxu0 0.0
      %805 = vmatpush1.msra.mxu0 0.0
      %806 = vmatprep.subr.mxu0 0.0
      %807 = vmatpush1.msra.mxu0 0.0
      %808 = vmatprep.subr.mxu0 0.0
      %809 = vmatpush1.msra.mxu0 0.0
      %810 = vmatprep.subr.mxu0 0.0
      %811 = vmatpush1.msra.mxu0 0.0
      %812 = vmatprep.subr.mxu0 0.0
      %813 = vmatpush1.msra.mxu0 0.0
      %814 = vmatprep.subr.mxu0 0.0
      %815 = vmatpush1.msra.mxu0 0.0
      %816 = vmatprep.subr.mxu0 0.0
      %817 = vmatpush1.msra.mxu0 0.0
      %818 = vmatprep.subr.mxu0 0.0
      %819 = vmatpush1.msra.mxu0 0.0
      %820 = vmatprep.subr.mxu0 0.0
      %821 = vmatpush1.msra.mxu0 0.0
      %822 = vmatprep.subr.mxu0 0.0
      %823 = vmatpush1.msra.mxu0 0.0
      %824 = vmatprep.subr.mxu0 0.0
      %825 = vmatpush1.msra.mxu0 0.0
      %826 = vmatprep.subr.mxu0 0.0
      %827 = vmatpush1.msra.mxu0 0.0
      %828 = vmatprep.subr.mxu0 0.0
      %829 = vmatpush1.msra.mxu0 0.0
      %830 = vmatprep.subr.mxu0 0.0
      %831 = vmatpush1.msra.mxu0 0.0
      %832 = vmatprep.subr.mxu0 0.0
      %833 = vmatpush1.msra.mxu0 0.0
      %834 = vmatprep.subr.mxu0 0.0
      %835 = vmatpush1.msra.mxu0 0.0
      %836 = vmatprep.subr.mxu0 0.0
      %837 = vmatpush1.msra.mxu0 0.0
      %838 = vmatprep.mubr.f32.mxu0 0.0
      %839 = vmatmul.mubr.f32.gmra.mrb[0].mxu0 %v679
      %v840 = vpop.f32.mrb[0].mxu0
      %v841 = vadd.f32 %v675, %v840
      %v842 = vpop.f32.mrb[0].mxu0
      %843 = vmatprep.mubr.f32.mxu0 0.0
      %844 = vmatmul.mubr.f32.gmra.mrb[0].mxu0 %v682
      %v845 = vpop.f32.mrb[0].mxu0
      %v846 = vadd.f32 %v675, %v845
      %v847 = vpop.f32.mrb[0].mxu0
      %848 = vmatprep.mubr.f32.mxu0 0.0
      %849 = vmatmul.mubr.f32.gmra.mrb[0].mxu0 %v685
      %v850 = vpop.f32.mrb[0].mxu0
      %v851 = vadd.f32 %v675, %v850
      %v852 = vpop.f32.mrb[0].mxu0
      %853 = vmatprep.mubr.f32.mxu0 0.0
      %854 = vmatmul.mubr.f32.gmra.mrb[0].mxu0 %v688
      %v855 = vpop.f32.mrb[0].mxu0
      %v856 = vadd.f32 %v675, %v855
      %v857 = vpop.f32.mrb[0].mxu0
      %858 = vmatprep.mubr.f32.mxu0 0.0
      %859 = vmatmul.mubr.f32.gmra.mrb[0].mxu0 %v691
      %v860 = vpop.f32.mrb[0].mxu0
      %v861 = vadd.f32 %v675, %v860
      %v862 = vpop.f32.mrb[0].mxu0
      %863 = vmatprep.mubr.f32.mxu0 0.0
      %864 = vmatmul.mubr.f32.gmra.mrb[0].mxu0 %v694
      %v865 = vpop.f32.mrb[0].mxu0
      %v866 = vadd.f32 %v675, %v865
      %v867 = vpop.f32.mrb[0].mxu0
      %868 = vmatprep.mubr.f32.mxu0 0.0
      %869 = vmatmul.mubr.f32.gmra.mrb[0].mxu0 %v697
      %v870 = vpop.f32.mrb[0].mxu0
      %v871 = vadd.f32 %v675, %v870
      %v872 = vpop.f32.mrb[0].mxu0
      %873 = vmatprep.mubr.f32.mxu0 0.0
      %874 = vmatmul.mubr.f32.gmra.mrb[0].mxu0 %v700
      %v875 = vpop.f32.mrb[0].mxu0
      %v876 = vadd.f32 %v675, %v875
      %v877 = vpop.f32.mrb[0].mxu0
      %878 = vmatprep.mubr.f32.mxu0 0.0
      %879 = vmatmul.mubr.f32.gmra.mrb[0].mxu0 %v703
      %v880 = vpop.f32.mrb[0].mxu0
      %v881 = vadd.f32 %v675, %v880
      %v882 = vpop.f32.mrb[0].mxu0
      %883 = vmatprep.mubr.f32.mxu0 0.0
      %884 = vmatmul.mubr.f32.gmra.mrb[0].mxu0 %v706
      %v885 = vpop.f32.mrb[0].mxu0
      %v886 = vadd.f32 %v675, %v885
      %v887 = vpop.f32.mrb[0].mxu0
      %888 = vmatprep.mubr.f32.mxu0 0.0
      %889 = vmatmul.mubr.f32.gmra.mrb[0].mxu0 %v709
      %v890 = vpop.f32.mrb[0].mxu0
      %v891 = vadd.f32 %v675, %v890
      %v892 = vpop.f32.mrb[0].mxu0
      %893 = vmatprep.mubr.f32.mxu0 0.0
      %894 = vmatmul.mubr.f32.gmra.mrb[0].mxu0 %v712
      %v895 = vpop.f32.mrb[0].mxu0
      %v896 = vadd.f32 %v675, %v895
      %v897 = vpop.f32.mrb[0].mxu0
      %898 = vmatprep.mubr.f32.mxu0 0.0
      %899 = vmatmul.mubr.f32.gmra.mrb[0].mxu0 %v715
      %v900 = vpop.f32.mrb[0].mxu0
      %v901 = vadd.f32 %v675, %v900
      %v902 = vpop.f32.mrb[0].mxu0
      %903 = vmatprep.mubr.f32.mxu0 0.0
      %904 = vmatmul.mubr.f32.gmra.mrb[0].mxu0 %v718
      %v905 = vpop.f32.mrb[0].mxu0
      %v906 = vadd.f32 %v675, %v905
      %v907 = vpop.f32.mrb[0].mxu0
      %908 = vmatprep.mubr.f32.mxu0 0.0
      %909 = vmatmul.mubr.f32.gmra.mrb[0].mxu0 %v721
      %v910 = vpop.f32.mrb[0].mxu0
      %v911 = vadd.f32 %v675, %v910
      %v912 = vpop.f32.mrb[0].mxu0
      %913 = vmatprep.mubr.f32.mxu0 0.0
      %914 = vmatmul.mubr.f32.gmra.mrb[0].mxu0 %v724
      %v915 = vpop.f32.mrb[0].mxu0
      %v916 = vadd.f32 %v675, %v915
      %v917 = vpop.f32.mrb[0].mxu0
      %918 = vmatprep.mubr.f32.mxu0 0.0
      %919 = vmatmul.mubr.f32.gmra.mrb[0].mxu0 %v727
      %v920 = vpop.f32.mrb[0].mxu0
      %v921 = vadd.f32 %v675, %v920
      %v922 = vpop.f32.mrb[0].mxu0
      %923 = vmatprep.mubr.f32.mxu0 0.0
      %924 = vmatmul.mubr.f32.gmra.mrb[0].mxu0 %v730
      %v925 = vpop.f32.mrb[0].mxu0
      %v926 = vadd.f32 %v675, %v925
      %v927 = vpop.f32.mrb[0].mxu0
      %928 = vmatprep.mubr.f32.mxu0 0.0
      %929 = vmatmul.mubr.f32.gmra.mrb[0].mxu0 %v733
      %v930 = vpop.f32.mrb[0].mxu0
      %v931 = vadd.f32 %v675, %v930
      %v932 = vpop.f32.mrb[0].mxu0
      %933 = vmatprep.mubr.f32.mxu0 0.0
      %934 = vmatmul.mubr.f32.gmra.mrb[0].mxu0 %v736
      %v935 = vpop.f32.mrb[0].mxu0
      %v936 = vadd.f32 %v675, %v935
      %v937 = vpop.f32.mrb[0].mxu0
      %938 = vmatprep.mubr.f32.mxu0 0.0
      %939 = vmatmul.mubr.f32.gmra.mrb[0].mxu0 %v739
      %v940 = vpop.f32.mrb[0].mxu0
      %v941 = vadd.f32 %v675, %v940
      %v942 = vpop.f32.mrb[0].mxu0
      %943 = vmatprep.mubr.f32.mxu0 0.0
      %944 = vmatmul.mubr.f32.gmra.mrb[0].mxu0 %v742
      %v945 = vpop.f32.mrb[0].mxu0
      %v946 = vadd.f32 %v675, %v945
      %v947 = vpop.f32.mrb[0].mxu0
      %948 = vmatprep.mubr.f32.mxu0 0.0
      %949 = vmatmul.mubr.f32.gmra.mrb[0].mxu0 %v745
      %v950 = vpop.f32.mrb[0].mxu0
      %v951 = vadd.f32 %v675, %v950
      %v952 = vpop.f32.mrb[0].mxu0
      %953 = vmatprep.mubr.f32.mxu0 0.0
      %954 = vmatmul.mubr.f32.gmra.mrb[0].mxu0 %v748
      %v955 = vpop.f32.mrb[0].mxu0
      %v956 = vadd.f32 %v675, %v955
      %v957 = vpop.f32.mrb[0].mxu0
      %958 = vmatprep.mubr.f32.mxu0 0.0
      %959 = vmatmul.mubr.f32.gmra.mrb[0].mxu0 %v751
      %v960 = vpop.f32.mrb[0].mxu0
      %v961 = vadd.f32 %v675, %v960
      %v962 = vpop.f32.mrb[0].mxu0
      %963 = vmatprep.mubr.f32.mxu0 0.0
      %964 = vmatmul.mubr.f32.gmra.mrb[0].mxu0 %v754
      %v965 = vpop.f32.mrb[0].mxu0
      %v966 = vadd.f32 %v675, %v965
      %v967 = vpop.f32.mrb[0].mxu0
      %968 = vmatprep.mubr.f32.mxu0 0.0
      %969 = vmatmul.mubr.f32.gmra.mrb[0].mxu0 %v757
      %v970 = vpop.f32.mrb[0].mxu0
      %v971 = vadd.f32 %v675, %v970
      %v972 = vpop.f32.mrb[0].mxu0
      %973 = vmatprep.mubr.f32.mxu0 0.0
      %974 = vmatmul.mubr.f32.gmra.mrb[0].mxu0 %v760
      %v975 = vpop.f32.mrb[0].mxu0
      %v976 = vadd.f32 %v675, %v975
      %v977 = vpop.f32.mrb[0].mxu0
      %978 = vmatprep.mubr.f32.mxu0 0.0
      %979 = vmatmul.mubr.f32.gmra.mrb[0].mxu0 %v763
      %v980 = vpop.f32.mrb[0].mxu0
      %v981 = vadd.f32 %v675, %v980
      %v982 = vpop.f32.mrb[0].mxu0
      %983 = vmatprep.mubr.f32.mxu0 0.0
      %984 = vmatmul.mubr.f32.gmra.mrb[0].mxu0 %v766
      %v985 = vpop.f32.mrb[0].mxu0
      %v986 = vadd.f32 %v675, %v985
      %v987 = vpop.f32.mrb[0].mxu0
      %988 = vmatprep.mubr.f32.mxu0 0.0
      %989 = vmatmul.mubr.f32.gmra.mrb[0].mxu0 %v769
      %v990 = vpop.f32.mrb[0].mxu0
      %v991 = vadd.f32 %v675, %v990
      %v992 = vpop.f32.mrb[0].mxu0
      %993 = vmatprep.mubr.f32.mxu0 0.0
      %994 = vmatmul.mubr.f32.gmra.mrb[0].mxu0 %v772
      %v995 = vpop.f32.mrb[0].mxu0
      %v996 = vadd.f32 %v675, %v995
      %v997 = vpop.f32.mrb[0].mxu0
      %998 = vdwg.mxu0
      %v999 = vld [vmem:[%s267] sm:$0xff]
      %v1000 = vld [vmem:[%s267 + $0x8] sm:$0xff]
      %v1001 = vld [vmem:[%s267 + $0x10] sm:$0xff]
      %v1002 = vld [vmem:[%s267 + $0x18] sm:$0xff]
      %v1003 = vld [vmem:[%s267 + $0x20] sm:$0xff]
      %v1004 = vld [vmem:[%s267 + $0x28] sm:$0xff]
      %v1005 = vld [vmem:[%s267 + $0x30] sm:$0xff]
      %v1006 = vld [vmem:[%s267 + $0x38] sm:$0xff]
      %v1007 = vld [vmem:[%s267 + $0x40] sm:$0xff]
      %v1008 = vld [vmem:[%s267 + $0x48] sm:$0xff]
      %v1009 = vld [vmem:[%s267 + $0x50] sm:$0xff]
      %v1010 = vld [vmem:[%s267 + $0x58] sm:$0xff]
      %v1011 = vld [vmem:[%s267 + $0x60] sm:$0xff]
      %v1012 = vld [vmem:[%s267 + $0x68] sm:$0xff]
      %v1013 = vld [vmem:[%s267 + $0x70] sm:$0xff]
      %v1014 = vld [vmem:[%s267 + $0x78] sm:$0xff]
      %v1015 = vld [vmem:[%s267 + $0x80] sm:$0xff]
      %v1016 = vld [vmem:[%s267 + $0x88] sm:$0xff]
      %v1017 = vld [vmem:[%s267 + $0x90] sm:$0xff]
      %v1018 = vld [vmem:[%s267 + $0x98] sm:$0xff]
      %v1019 = vld [vmem:[%s267 + $0xa0] sm:$0xff]
      %v1020 = vld [vmem:[%s267 + $0xa8] sm:$0xff]
      %v1021 = vld [vmem:[%s267 + $0xb0] sm:$0xff]
      %v1022 = vld [vmem:[%s267 + $0xb8] sm:$0xff]
      %v1023 = vld [vmem:[%s267 + $0xc0] sm:$0xff]
      %v1024 = vld [vmem:[%s267 + $0xc8] sm:$0xff]
      %v1025 = vld [vmem:[%s267 + $0xd0] sm:$0xff]
      %v1026 = vld [vmem:[%s267 + $0xd8] sm:$0xff]
      %v1027 = vld [vmem:[%s267 + $0xe0] sm:$0xff]
      %v1028 = vld [vmem:[%s267 + $0xe8] sm:$0xff]
      %v1029 = vld [vmem:[%s267 + $0xf0] sm:$0xff]
      %v1030 = vld [vmem:[%s267 + $0xf8] sm:$0xff]
      %1063 = vrot.lane.b32.xlu0 %v999, 127
      %v1064 = vpop.permute.xlu0 %1063
      %1065 = vrot.lane.b32.xlu0 %v1000, 127
      %v1066 = vpop.permute.xlu0 %1065
      %1067 = vrot.lane.b32.xlu0 %v1001, 127
      %v1068 = vpop.permute.xlu0 %1067
      %1069 = vrot.lane.b32.xlu0 %v1002, 127
      %v1070 = vpop.permute.xlu0 %1069
      %1071 = vrot.lane.b32.xlu0 %v1003, 127
      %v1072 = vpop.permute.xlu0 %1071
      %1073 = vrot.lane.b32.xlu0 %v1004, 127
      %v1074 = vpop.permute.xlu0 %1073
      %1075 = vrot.lane.b32.xlu0 %v1005, 127
      %v1076 = vpop.permute.xlu0 %1075
      %1077 = vrot.lane.b32.xlu0 %v1006, 127
      %v1078 = vpop.permute.xlu0 %1077
      %1079 = vrot.lane.b32.xlu0 %v1007, 127
      %v1080 = vpop.permute.xlu0 %1079
      %1081 = vrot.lane.b32.xlu0 %v1008, 127
      %v1082 = vpop.permute.xlu0 %1081
      %1083 = vrot.lane.b32.xlu0 %v1009, 127
      %v1084 = vpop.permute.xlu0 %1083
      %1085 = vrot.lane.b32.xlu0 %v1010, 127
      %v1086 = vpop.permute.xlu0 %1085
      %1087 = vrot.lane.b32.xlu0 %v1011, 127
      %v1088 = vpop.permute.xlu0 %1087
      %1089 = vrot.lane.b32.xlu0 %v1012, 127
      %v1090 = vpop.permute.xlu0 %1089
      %1091 = vrot.lane.b32.xlu0 %v1013, 127
      %v1092 = vpop.permute.xlu0 %1091
      %1093 = vrot.lane.b32.xlu0 %v1014, 127
      %v1094 = vpop.permute.xlu0 %1093
      %1095 = vrot.lane.b32.xlu0 %v1015, 127
      %v1096 = vpop.permute.xlu0 %1095
      %1097 = vrot.lane.b32.xlu0 %v1016, 127
      %v1098 = vpop.permute.xlu0 %1097
      %1099 = vrot.lane.b32.xlu0 %v1017, 127
      %v1100 = vpop.permute.xlu0 %1099
      %1101 = vrot.lane.b32.xlu0 %v1018, 127
      %v1102 = vpop.permute.xlu0 %1101
      %1103 = vrot.lane.b32.xlu0 %v1019, 127
      %v1104 = vpop.permute.xlu0 %1103
      %1105 = vrot.lane.b32.xlu0 %v1020, 127
      %v1106 = vpop.permute.xlu0 %1105
      %1107 = vrot.lane.b32.xlu0 %v1021, 127
      %v1108 = vpop.permute.xlu0 %1107
      %1109 = vrot.lane.b32.xlu0 %v1022, 127
      %v1110 = vpop.permute.xlu0 %1109
      %1111 = vrot.lane.b32.xlu0 %v1023, 127
      %v1112 = vpop.permute.xlu0 %1111
      %1113 = vrot.lane.b32.xlu0 %v1024, 127
      %v1114 = vpop.permute.xlu0 %1113
      %1115 = vrot.lane.b32.xlu0 %v1025, 127
      %v1116 = vpop.permute.xlu0 %1115
      %1117 = vrot.lane.b32.xlu0 %v1026, 127
      %v1118 = vpop.permute.xlu0 %1117
      %1119 = vrot.lane.b32.xlu0 %v1027, 127
      %v1120 = vpop.permute.xlu0 %1119
      %1121 = vrot.lane.b32.xlu0 %v1028, 127
      %v1122 = vpop.permute.xlu0 %1121
      %1123 = vrot.lane.b32.xlu0 %v1029, 127
      %v1124 = vpop.permute.xlu0 %1123
      %1125 = vrot.lane.b32.xlu0 %v1030, 127
      %v1126 = vpop.permute.xlu0 %1125
      %v1159 = vmul.f32 %v999, %v1064
      %v1160 = vmul.f32 %v1000, %v1066
      %v1161 = vmul.f32 %v1001, %v1068
      %v1162 = vmul.f32 %v1002, %v1070
      %v1163 = vmul.f32 %v1003, %v1072
      %v1164 = vmul.f32 %v1004, %v1074
      %v1165 = vmul.f32 %v1005, %v1076
      %v1166 = vmul.f32 %v1006, %v1078
      %v1167 = vmul.f32 %v1007, %v1080
      %v1168 = vmul.f32 %v1008, %v1082
      %v1169 = vmul.f32 %v1009, %v1084
      %v1170 = vmul.f32 %v1010, %v1086
      %v1171 = vmul.f32 %v1011, %v1088
      %v1172 = vmul.f32 %v1012, %v1090
      %v1173 = vmul.f32 %v1013, %v1092
      %v1174 = vmul.f32 %v1014, %v1094
      %v1175 = vmul.f32 %v1015, %v1096
      %v1176 = vmul.f32 %v1016, %v1098
      %v1177 = vmul.f32 %v1017, %v1100
      %v1178 = vmul.f32 %v1018, %v1102
      %v1179 = vmul.f32 %v1019, %v1104
      %v1180 = vmul.f32 %v1020, %v1106
      %v1181 = vmul.f32 %v1021, %v1108
      %v1182 = vmul.f32 %v1022, %v1110
      %v1183 = vmul.f32 %v1023, %v1112
      %v1184 = vmul.f32 %v1024, %v1114
      %v1185 = vmul.f32 %v1025, %v1116
      %v1186 = vmul.f32 %v1026, %v1118
      %v1187 = vmul.f32 %v1027, %v1120
      %v1188 = vmul.f32 %v1028, %v1122
      %v1189 = vmul.f32 %v1029, %v1124
      %v1190 = vmul.f32 %v1030, %v1126
      %1223 = vrot.lane.b32.xlu0 %v1159, 127
      %v1224 = vpop.permute.xlu0 %1223
      %1225 = vrot.lane.b32.xlu0 %v1160, 127
      %v1226 = vpop.permute.xlu0 %1225
      %1227 = vrot.lane.b32.xlu0 %v1161, 127
      %v1228 = vpop.permute.xlu0 %1227
      %1229 = vrot.lane.b32.xlu0 %v1162, 127
      %v1230 = vpop.permute.xlu0 %1229
      %1231 = vrot.lane.b32.xlu0 %v1163, 127
      %v1232 = vpop.permute.xlu0 %1231
      %1233 = vrot.lane.b32.xlu0 %v1164, 127
      %v1234 = vpop.permute.xlu0 %1233
      %1235 = vrot.lane.b32.xlu0 %v1165, 127
      %v1236 = vpop.permute.xlu0 %1235
      %1237 = vrot.lane.b32.xlu0 %v1166, 127
      %v1238 = vpop.permute.xlu0 %1237
      %1239 = vrot.lane.b32.xlu0 %v1167, 127
      %v1240 = vpop.permute.xlu0 %1239
      %1241 = vrot.lane.b32.xlu0 %v1168, 127
      %v1242 = vpop.permute.xlu0 %1241
      %1243 = vrot.lane.b32.xlu0 %v1169, 127
      %v1244 = vpop.permute.xlu0 %1243
      %1245 = vrot.lane.b32.xlu0 %v1170, 127
      %v1246 = vpop.permute.xlu0 %1245
      %1247 = vrot.lane.b32.xlu0 %v1171, 127
      %v1248 = vpop.permute.xlu0 %1247
      %1249 = vrot.lane.b32.xlu0 %v1172, 127
      %v1250 = vpop.permute.xlu0 %1249
      %1251 = vrot.lane.b32.xlu0 %v1173, 127
      %v1252 = vpop.permute.xlu0 %1251
      %1253 = vrot.lane.b32.xlu0 %v1174, 127
      %v1254 = vpop.permute.xlu0 %1253
      %1255 = vrot.lane.b32.xlu0 %v1175, 127
      %v1256 = vpop.permute.xlu0 %1255
      %1257 = vrot.lane.b32.xlu0 %v1176, 127
      %v1258 = vpop.permute.xlu0 %1257
      %1259 = vrot.lane.b32.xlu0 %v1177, 127
      %v1260 = vpop.permute.xlu0 %1259
      %1261 = vrot.lane.b32.xlu0 %v1178, 127
      %v1262 = vpop.permute.xlu0 %1261
      %1263 = vrot.lane.b32.xlu0 %v1179, 127
      %v1264 = vpop.permute.xlu0 %1263
      %1265 = vrot.lane.b32.xlu0 %v1180, 127
      %v1266 = vpop.permute.xlu0 %1265
      %1267 = vrot.lane.b32.xlu0 %v1181, 127
      %v1268 = vpop.permute.xlu0 %1267
      %1269 = vrot.lane.b32.xlu0 %v1182, 127
      %v1270 = vpop.permute.xlu0 %1269
      %1271 = vrot.lane.b32.xlu0 %v1183, 127
      %v1272 = vpop.permute.xlu0 %1271
      %1273 = vrot.lane.b32.xlu0 %v1184, 127
      %v1274 = vpop.permute.xlu0 %1273
      %1275 = vrot.lane.b32.xlu0 %v1185, 127
      %v1276 = vpop.permute.xlu0 %1275
      %1277 = vrot.lane.b32.xlu0 %v1186, 127
      %v1278 = vpop.permute.xlu0 %1277
      %1279 = vrot.lane.b32.xlu0 %v1187, 127
      %v1280 = vpop.permute.xlu0 %1279
      %1281 = vrot.lane.b32.xlu0 %v1188, 127
      %v1282 = vpop.permute.xlu0 %1281
      %1283 = vrot.lane.b32.xlu0 %v1189, 127
      %v1284 = vpop.permute.xlu0 %1283
      %1285 = vrot.lane.b32.xlu0 %v1190, 127
      %v1286 = vpop.permute.xlu0 %1285
      %v1319 = vsub.f32 %v999, %v1224
      %v1320 = vsub.f32 %v1000, %v1226
      %v1321 = vsub.f32 %v1001, %v1228
      %v1322 = vsub.f32 %v1002, %v1230
      %v1323 = vsub.f32 %v1003, %v1232
      %v1324 = vsub.f32 %v1004, %v1234
      %v1325 = vsub.f32 %v1005, %v1236
      %v1326 = vsub.f32 %v1006, %v1238
      %v1327 = vsub.f32 %v1007, %v1240
      %v1328 = vsub.f32 %v1008, %v1242
      %v1329 = vsub.f32 %v1009, %v1244
      %v1330 = vsub.f32 %v1010, %v1246
      %v1331 = vsub.f32 %v1011, %v1248
      %v1332 = vsub.f32 %v1012, %v1250
      %v1333 = vsub.f32 %v1013, %v1252
      %v1334 = vsub.f32 %v1014, %v1254
      %v1335 = vsub.f32 %v1015, %v1256
      %v1336 = vsub.f32 %v1016, %v1258
      %v1337 = vsub.f32 %v1017, %v1260
      %v1338 = vsub.f32 %v1018, %v1262
      %v1339 = vsub.f32 %v1019, %v1264
      %v1340 = vsub.f32 %v1020, %v1266
      %v1341 = vsub.f32 %v1021, %v1268
      %v1342 = vsub.f32 %v1022, %v1270
      %v1343 = vsub.f32 %v1023, %v1272
      %v1344 = vsub.f32 %v1024, %v1274
      %v1345 = vsub.f32 %v1025, %v1276
      %v1346 = vsub.f32 %v1026, %v1278
      %v1347 = vsub.f32 %v1027, %v1280
      %v1348 = vsub.f32 %v1028, %v1282
      %v1349 = vsub.f32 %v1029, %v1284
      %v1350 = vsub.f32 %v1030, %v1286
      %v1351 = vlaneseq
      %v1352 = vand.u32 %v1351, 127
      %1354 = vset.pattern.permute.xlu0 0
      %1355 = vperm.xlu0 %1354, %v1319
      %v1356 = vpop.permute.xlu0 %1355
      %1359 = vset.pattern.permute.xlu0 0
      %1360 = vperm.xlu0 %1359, %v1320
      %v1361 = vpop.permute.xlu0 %1360
      %1364 = vset.pattern.permute.xlu0 0
      %1365 = vperm.xlu0 %1364, %v1321
      %v1366 = vpop.permute.xlu0 %1365
      %1369 = vset.pattern.permute.xlu0 0
      %1370 = vperm.xlu0 %1369, %v1322
      %v1371 = vpop.permute.xlu0 %1370
      %1374 = vset.pattern.permute.xlu0 0
      %1375 = vperm.xlu0 %1374, %v1323
      %v1376 = vpop.permute.xlu0 %1375
      %1379 = vset.pattern.permute.xlu0 0
      %1380 = vperm.xlu0 %1379, %v1324
      %v1381 = vpop.permute.xlu0 %1380
      %1384 = vset.pattern.permute.xlu0 0
      %1385 = vperm.xlu0 %1384, %v1325
      %v1386 = vpop.permute.xlu0 %1385
      %1389 = vset.pattern.permute.xlu0 0
      %1390 = vperm.xlu0 %1389, %v1326
      %v1391 = vpop.permute.xlu0 %1390
      %1394 = vset.pattern.permute.xlu0 0
      %1395 = vperm.xlu0 %1394, %v1327
      %v1396 = vpop.permute.xlu0 %1395
      %1399 = vset.pattern.permute.xlu0 0
      %1400 = vperm.xlu0 %1399, %v1328
      %v1401 = vpop.permute.xlu0 %1400
      %1404 = vset.pattern.permute.xlu0 0
      %1405 = vperm.xlu0 %1404, %v1329
      %v1406 = vpop.permute.xlu0 %1405
      %1409 = vset.pattern.permute.xlu0 0
      %1410 = vperm.xlu0 %1409, %v1330
      %v1411 = vpop.permute.xlu0 %1410
      %1414 = vset.pattern.permute.xlu0 0
      %1415 = vperm.xlu0 %1414, %v1331
      %v1416 = vpop.permute.xlu0 %1415
      %1419 = vset.pattern.permute.xlu0 0
      %1420 = vperm.xlu0 %1419, %v1332
      %v1421 = vpop.permute.xlu0 %1420
      %1424 = vset.pattern.permute.xlu0 0
      %1425 = vperm.xlu0 %1424, %v1333
      %v1426 = vpop.permute.xlu0 %1425
      %1429 = vset.pattern.permute.xlu0 0
      %1430 = vperm.xlu0 %1429, %v1334
      %v1431 = vpop.permute.xlu0 %1430
      %1434 = vset.pattern.permute.xlu0 0
      %1435 = vperm.xlu0 %1434, %v1335
      %v1436 = vpop.permute.xlu0 %1435
      %1439 = vset.pattern.permute.xlu0 0
      %1440 = vperm.xlu0 %1439, %v1336
      %v1441 = vpop.permute.xlu0 %1440
      %1444 = vset.pattern.permute.xlu0 0
      %1445 = vperm.xlu0 %1444, %v1337
      %v1446 = vpop.permute.xlu0 %1445
      %1449 = vset.pattern.permute.xlu0 0
      %1450 = vperm.xlu0 %1449, %v1338
      %v1451 = vpop.permute.xlu0 %1450
      %1454 = vset.pattern.permute.xlu0 0
      %1455 = vperm.xlu0 %1454, %v1339
      %v1456 = vpop.permute.xlu0 %1455
      %1459 = vset.pattern.permute.xlu0 0
      %1460 = vperm.xlu0 %1459, %v1340
      %v1461 = vpop.permute.xlu0 %1460
      %1464 = vset.pattern.permute.xlu0 0
      %1465 = vperm.xlu0 %1464, %v1341
      %v1466 = vpop.permute.xlu0 %1465
      %1469 = vset.pattern.permute.xlu0 0
      %1470 = vperm.xlu0 %1469, %v1342
      %v1471 = vpop.permute.xlu0 %1470
      %1474 = vset.pattern.permute.xlu0 0
      %1475 = vperm.xlu0 %1474, %v1343
      %v1476 = vpop.permute.xlu0 %1475
      %1479 = vset.pattern.permute.xlu0 0
      %1480 = vperm.xlu0 %1479, %v1344
      %v1481 = vpop.permute.xlu0 %1480
      %1484 = vset.pattern.permute.xlu0 0
      %1485 = vperm.xlu0 %1484, %v1345
      %v1486 = vpop.permute.xlu0 %1485
      %1489 = vset.pattern.permute.xlu0 0
      %1490 = vperm.xlu0 %1489, %v1346
      %v1491 = vpop.permute.xlu0 %1490
      %1494 = vset.pattern.permute.xlu0 0
      %1495 = vperm.xlu0 %1494, %v1347
      %v1496 = vpop.permute.xlu0 %1495
      %1499 = vset.pattern.permute.xlu0 0
      %1500 = vperm.xlu0 %1499, %v1348
      %v1501 = vpop.permute.xlu0 %1500
      %1504 = vset.pattern.permute.xlu0 0
      %1505 = vperm.xlu0 %1504, %v1349
      %v1506 = vpop.permute.xlu0 %1505
      %1509 = vset.pattern.permute.xlu0 0
      %1510 = vperm.xlu0 %1509, %v1350
      %v1511 = vpop.permute.xlu0 %1510
      %v1513 = vsub.f32 %v841, %v1356
      %v1514 = vsub.f32 %v846, %v1361
      %v1515 = vsub.f32 %v851, %v1366
      %v1516 = vsub.f32 %v856, %v1371
      %v1517 = vsub.f32 %v861, %v1376
      %v1518 = vsub.f32 %v866, %v1381
      %v1519 = vsub.f32 %v871, %v1386
      %v1520 = vsub.f32 %v876, %v1391
      %v1521 = vsub.f32 %v881, %v1396
      %v1522 = vsub.f32 %v886, %v1401
      %v1523 = vsub.f32 %v891, %v1406
      %v1524 = vsub.f32 %v896, %v1411
      %v1525 = vsub.f32 %v901, %v1416
      %v1526 = vsub.f32 %v906, %v1421
      %v1527 = vsub.f32 %v911, %v1426
      %v1528 = vsub.f32 %v916, %v1431
      %v1529 = vsub.f32 %v921, %v1436
      %v1530 = vsub.f32 %v926, %v1441
      %v1531 = vsub.f32 %v931, %v1446
      %v1532 = vsub.f32 %v936, %v1451
      %v1533 = vsub.f32 %v941, %v1456
      %v1534 = vsub.f32 %v946, %v1461
      %v1535 = vsub.f32 %v951, %v1466
      %v1536 = vsub.f32 %v956, %v1471
      %v1537 = vsub.f32 %v961, %v1476
      %v1538 = vsub.f32 %v966, %v1481
      %v1539 = vsub.f32 %v971, %v1486
      %v1540 = vsub.f32 %v976, %v1491
      %v1541 = vsub.f32 %v981, %v1496
      %v1542 = vsub.f32 %v986, %v1501
      %v1543 = vsub.f32 %v991, %v1506
      %v1544 = vsub.f32 %v996, %v1511
      %v1545 = vand.u32 2147483647, %v1513
      %v1546 = vand.u32 2147483647, %v1514
      %v1547 = vand.u32 2147483647, %v1515
      %v1548 = vand.u32 2147483647, %v1516
      %v1549 = vand.u32 2147483647, %v1517
      %v1550 = vand.u32 2147483647, %v1518
      %v1551 = vand.u32 2147483647, %v1519
      %v1552 = vand.u32 2147483647, %v1520
      %v1553 = vand.u32 2147483647, %v1521
      %v1554 = vand.u32 2147483647, %v1522
      %v1555 = vand.u32 2147483647, %v1523
      %v1556 = vand.u32 2147483647, %v1524
      %v1557 = vand.u32 2147483647, %v1525
      %v1558 = vand.u32 2147483647, %v1526
      %v1559 = vand.u32 2147483647, %v1527
      %v1560 = vand.u32 2147483647, %v1528
      %v1561 = vand.u32 2147483647, %v1529
      %v1562 = vand.u32 2147483647, %v1530
      %v1563 = vand.u32 2147483647, %v1531
      %v1564 = vand.u32 2147483647, %v1532
      %v1565 = vand.u32 2147483647, %v1533
      %v1566 = vand.u32 2147483647, %v1534
      %v1567 = vand.u32 2147483647, %v1535
      %v1568 = vand.u32 2147483647, %v1536
      %v1569 = vand.u32 2147483647, %v1537
      %v1570 = vand.u32 2147483647, %v1538
      %v1571 = vand.u32 2147483647, %v1539
      %v1572 = vand.u32 2147483647, %v1540
      %v1573 = vand.u32 2147483647, %v1541
      %v1574 = vand.u32 2147483647, %v1542
      %v1575 = vand.u32 2147483647, %v1543
      %v1576 = vand.u32 2147483647, %v1544
      %1577 = vset.pattern.permute.xlu0 1
      %1578 = vperm.xlu0 %1577, %v999
      %v1579 = vpop.permute.xlu0 %1578
      %1581 = vset.pattern.permute.xlu0 1
      %1582 = vperm.xlu0 %1581, %v1000
      %v1583 = vpop.permute.xlu0 %1582
      %1585 = vset.pattern.permute.xlu0 1
      %1586 = vperm.xlu0 %1585, %v1001
      %v1587 = vpop.permute.xlu0 %1586
      %1589 = vset.pattern.permute.xlu0 1
      %1590 = vperm.xlu0 %1589, %v1002
      %v1591 = vpop.permute.xlu0 %1590
      %1593 = vset.pattern.permute.xlu0 1
      %1594 = vperm.xlu0 %1593, %v1003
      %v1595 = vpop.permute.xlu0 %1594
      %1597 = vset.pattern.permute.xlu0 1
      %1598 = vperm.xlu0 %1597, %v1004
      %v1599 = vpop.permute.xlu0 %1598
      %1601 = vset.pattern.permute.xlu0 1
      %1602 = vperm.xlu0 %1601, %v1005
      %v1603 = vpop.permute.xlu0 %1602
      %1605 = vset.pattern.permute.xlu0 1
      %1606 = vperm.xlu0 %1605, %v1006
      %v1607 = vpop.permute.xlu0 %1606
      %1609 = vset.pattern.permute.xlu0 1
      %1610 = vperm.xlu0 %1609, %v1007
      %v1611 = vpop.permute.xlu0 %1610
      %1613 = vset.pattern.permute.xlu0 1
      %1614 = vperm.xlu0 %1613, %v1008
      %v1615 = vpop.permute.xlu0 %1614
      %1617 = vset.pattern.permute.xlu0 1
      %1618 = vperm.xlu0 %1617, %v1009
      %v1619 = vpop.permute.xlu0 %1618
      %1621 = vset.pattern.permute.xlu0 1
      %1622 = vperm.xlu0 %1621, %v1010
      %v1623 = vpop.permute.xlu0 %1622
      %1625 = vset.pattern.permute.xlu0 1
      %1626 = vperm.xlu0 %1625, %v1011
      %v1627 = vpop.permute.xlu0 %1626
      %1629 = vset.pattern.permute.xlu0 1
      %1630 = vperm.xlu0 %1629, %v1012
      %v1631 = vpop.permute.xlu0 %1630
      %1633 = vset.pattern.permute.xlu0 1
      %1634 = vperm.xlu0 %1633, %v1013
      %v1635 = vpop.permute.xlu0 %1634
      %1637 = vset.pattern.permute.xlu0 1
      %1638 = vperm.xlu0 %1637, %v1014
      %v1639 = vpop.permute.xlu0 %1638
      %1641 = vset.pattern.permute.xlu0 1
      %1642 = vperm.xlu0 %1641, %v1015
      %v1643 = vpop.permute.xlu0 %1642
      %1645 = vset.pattern.permute.xlu0 1
      %1646 = vperm.xlu0 %1645, %v1016
      %v1647 = vpop.permute.xlu0 %1646
      %1649 = vset.pattern.permute.xlu0 1
      %1650 = vperm.xlu0 %1649, %v1017
      %v1651 = vpop.permute.xlu0 %1650
      %1653 = vset.pattern.permute.xlu0 1
      %1654 = vperm.xlu0 %1653, %v1018
      %v1655 = vpop.permute.xlu0 %1654
      %1657 = vset.pattern.permute.xlu0 1
      %1658 = vperm.xlu0 %1657, %v1019
      %v1659 = vpop.permute.xlu0 %1658
      %1661 = vset.pattern.permute.xlu0 1
      %1662 = vperm.xlu0 %1661, %v1020
      %v1663 = vpop.permute.xlu0 %1662
      %1665 = vset.pattern.permute.xlu0 1
      %1666 = vperm.xlu0 %1665, %v1021
      %v1667 = vpop.permute.xlu0 %1666
      %1669 = vset.pattern.permute.xlu0 1
      %1670 = vperm.xlu0 %1669, %v1022
      %v1671 = vpop.permute.xlu0 %1670
      %1673 = vset.pattern.permute.xlu0 1
      %1674 = vperm.xlu0 %1673, %v1023
      %v1675 = vpop.permute.xlu0 %1674
      %1677 = vset.pattern.permute.xlu0 1
      %1678 = vperm.xlu0 %1677, %v1024
      %v1679 = vpop.permute.xlu0 %1678
      %1681 = vset.pattern.permute.xlu0 1
      %1682 = vperm.xlu0 %1681, %v1025
      %v1683 = vpop.permute.xlu0 %1682
      %1685 = vset.pattern.permute.xlu0 1
      %1686 = vperm.xlu0 %1685, %v1026
      %v1687 = vpop.permute.xlu0 %1686
      %1689 = vset.pattern.permute.xlu0 1
      %1690 = vperm.xlu0 %1689, %v1027
      %v1691 = vpop.permute.xlu0 %1690
      %1693 = vset.pattern.permute.xlu0 1
      %1694 = vperm.xlu0 %1693, %v1028
      %v1695 = vpop.permute.xlu0 %1694
      %1697 = vset.pattern.permute.xlu0 1
      %1698 = vperm.xlu0 %1697, %v1029
      %v1699 = vpop.permute.xlu0 %1698
      %1701 = vset.pattern.permute.xlu0 1
      %1702 = vperm.xlu0 %1701, %v1030
      %v1703 = vpop.permute.xlu0 %1702
      %v1705 = vmul.f32 %v1545, %v1579
      %v1706 = vmul.f32 %v1546, %v1583
      %v1707 = vmul.f32 %v1547, %v1587
      %v1708 = vmul.f32 %v1548, %v1591
      %v1709 = vmul.f32 %v1549, %v1595
      %v1710 = vmul.f32 %v1550, %v1599
      %v1711 = vmul.f32 %v1551, %v1603
      %v1712 = vmul.f32 %v1552, %v1607
      %v1713 = vmul.f32 %v1553, %v1611
      %v1714 = vmul.f32 %v1554, %v1615
      %v1715 = vmul.f32 %v1555, %v1619
      %v1716 = vmul.f32 %v1556, %v1623
      %v1717 = vmul.f32 %v1557, %v1627
      %v1718 = vmul.f32 %v1558, %v1631
      %v1719 = vmul.f32 %v1559, %v1635
      %v1720 = vmul.f32 %v1560, %v1639
      %v1721 = vmul.f32 %v1561, %v1643
      %v1722 = vmul.f32 %v1562, %v1647
      %v1723 = vmul.f32 %v1563, %v1651
      %v1724 = vmul.f32 %v1564, %v1655
      %v1725 = vmul.f32 %v1565, %v1659
      %v1726 = vmul.f32 %v1566, %v1663
      %v1727 = vmul.f32 %v1567, %v1667
      %v1728 = vmul.f32 %v1568, %v1671
      %v1729 = vmul.f32 %v1569, %v1675
      %v1730 = vmul.f32 %v1570, %v1679
      %v1731 = vmul.f32 %v1571, %v1683
      %v1732 = vmul.f32 %v1572, %v1687
      %v1733 = vmul.f32 %v1573, %v1691
      %v1734 = vmul.f32 %v1574, %v1695
      %v1735 = vmul.f32 %v1575, %v1699
      %v1736 = vmul.f32 %v1576, %v1703
      %vm1737 = vcmp.lt.s32.totalorder %v1352, 2
      %v1738 = vsel %vm1737, 1, 0
      %vm1739 = vcmp.eq.s32.totalorder %v1738, 1
      %v1740 = vsel %vm1739, %v1705, 0.0
      %v1741 = vsel %vm1739, %v1706, 0.0
      %v1742 = vsel %vm1739, %v1707, 0.0
      %v1743 = vsel %vm1739, %v1708, 0.0
      %v1744 = vsel %vm1739, %v1709, 0.0
      %v1745 = vsel %vm1739, %v1710, 0.0
      %v1746 = vsel %vm1739, %v1711, 0.0
      %v1747 = vsel %vm1739, %v1712, 0.0
      %v1748 = vsel %vm1739, %v1713, 0.0
      %v1749 = vsel %vm1739, %v1714, 0.0
      %v1750 = vsel %vm1739, %v1715, 0.0
      %v1751 = vsel %vm1739, %v1716, 0.0
      %v1752 = vsel %vm1739, %v1717, 0.0
      %v1753 = vsel %vm1739, %v1718, 0.0
      %v1754 = vsel %vm1739, %v1719, 0.0
      %v1755 = vsel %vm1739, %v1720, 0.0
      %v1756 = vsel %vm1739, %v1721, 0.0
      %v1757 = vsel %vm1739, %v1722, 0.0
      %v1758 = vsel %vm1739, %v1723, 0.0
      %v1759 = vsel %vm1739, %v1724, 0.0
      %v1760 = vsel %vm1739, %v1725, 0.0
      %v1761 = vsel %vm1739, %v1726, 0.0
      %v1762 = vsel %vm1739, %v1727, 0.0
      %v1763 = vsel %vm1739, %v1728, 0.0
      %v1764 = vsel %vm1739, %v1729, 0.0
      %v1765 = vsel %vm1739, %v1730, 0.0
      %v1766 = vsel %vm1739, %v1731, 0.0
      %v1767 = vsel %vm1739, %v1732, 0.0
      %v1768 = vsel %vm1739, %v1733, 0.0
      %v1769 = vsel %vm1739, %v1734, 0.0
      %v1770 = vsel %vm1739, %v1735, 0.0
      %v1771 = vsel %vm1739, %v1736, 0.0
      %vm1772 = vcmp.eq.s32.totalorder %v1352, 2
      %v1773 = vsel %vm1772, 1, 0
      %vm1774 = vcmp.eq.s32.totalorder %v1773, 1
      %v1775 = vsel %vm1774, %v1579, 0.0
      %v1776 = vsel %vm1774, %v1583, 0.0
      %v1777 = vsel %vm1774, %v1587, 0.0
      %v1778 = vsel %vm1774, %v1591, 0.0
      %v1779 = vsel %vm1774, %v1595, 0.0
      %v1780 = vsel %vm1774, %v1599, 0.0
      %v1781 = vsel %vm1774, %v1603, 0.0
      %v1782 = vsel %vm1774, %v1607, 0.0
      %v1783 = vsel %vm1774, %v1611, 0.0
      %v1784 = vsel %vm1774, %v1615, 0.0
      %v1785 = vsel %vm1774, %v1619, 0.0
      %v1786 = vsel %vm1774, %v1623, 0.0
      %v1787 = vsel %vm1774, %v1627, 0.0
      %v1788 = vsel %vm1774, %v1631, 0.0
      %v1789 = vsel %vm1774, %v1635, 0.0
      %v1790 = vsel %vm1774, %v1639, 0.0
      %v1791 = vsel %vm1774, %v1643, 0.0
      %v1792 = vsel %vm1774, %v1647, 0.0
      %v1793 = vsel %vm1774, %v1651, 0.0
      %v1794 = vsel %vm1774, %v1655, 0.0
      %v1795 = vsel %vm1774, %v1659, 0.0
      %v1796 = vsel %vm1774, %v1663, 0.0
      %v1797 = vsel %vm1774, %v1667, 0.0
      %v1798 = vsel %vm1774, %v1671, 0.0
      %v1799 = vsel %vm1774, %v1675, 0.0
      %v1800 = vsel %vm1774, %v1679, 0.0
      %v1801 = vsel %vm1774, %v1683, 0.0
      %v1802 = vsel %vm1774, %v1687, 0.0
      %v1803 = vsel %vm1774, %v1691, 0.0
      %v1804 = vsel %vm1774, %v1695, 0.0
      %v1805 = vsel %vm1774, %v1699, 0.0
      %v1806 = vsel %vm1774, %v1703, 0.0
      %v1807 = vadd.f32 %v1740, %v1775
      %v1808 = vadd.f32 %v1741, %v1776
      %v1809 = vadd.f32 %v1742, %v1777
      %v1810 = vadd.f32 %v1743, %v1778
      %v1811 = vadd.f32 %v1744, %v1779
      %v1812 = vadd.f32 %v1745, %v1780
      %v1813 = vadd.f32 %v1746, %v1781
      %v1814 = vadd.f32 %v1747, %v1782
      %v1815 = vadd.f32 %v1748, %v1783
      %v1816 = vadd.f32 %v1749, %v1784
      %v1817 = vadd.f32 %v1750, %v1785
      %v1818 = vadd.f32 %v1751, %v1786
      %v1819 = vadd.f32 %v1752, %v1787
      %v1820 = vadd.f32 %v1753, %v1788
      %v1821 = vadd.f32 %v1754, %v1789
      %v1822 = vadd.f32 %v1755, %v1790
      %v1823 = vadd.f32 %v1756, %v1791
      %v1824 = vadd.f32 %v1757, %v1792
      %v1825 = vadd.f32 %v1758, %v1793
      %v1826 = vadd.f32 %v1759, %v1794
      %v1827 = vadd.f32 %v1760, %v1795
      %v1828 = vadd.f32 %v1761, %v1796
      %v1829 = vadd.f32 %v1762, %v1797
      %v1830 = vadd.f32 %v1763, %v1798
      %v1831 = vadd.f32 %v1764, %v1799
      %v1832 = vadd.f32 %v1765, %v1800
      %v1833 = vadd.f32 %v1766, %v1801
      %v1834 = vadd.f32 %v1767, %v1802
      %v1835 = vadd.f32 %v1768, %v1803
      %v1836 = vadd.f32 %v1769, %v1804
      %v1837 = vadd.f32 %v1770, %v1805
      %v1838 = vadd.f32 %v1771, %v1806
      %v1839 = vadd.f32 %v1807, %v1808
      %v1840 = vadd.f32 %v1839, %v1809
      %v1841 = vadd.f32 %v1840, %v1810
      %v1842 = vadd.f32 %v1841, %v1811
      %v1843 = vadd.f32 %v1842, %v1812
      %v1844 = vadd.f32 %v1843, %v1813
      %v1845 = vadd.f32 %v1844, %v1814
      %v1846 = vadd.f32 %v1845, %v1815
      %v1847 = vadd.f32 %v1846, %v1816
      %v1848 = vadd.f32 %v1847, %v1817
      %v1849 = vadd.f32 %v1848, %v1818
      %v1850 = vadd.f32 %v1849, %v1819
      %v1851 = vadd.f32 %v1850, %v1820
      %v1852 = vadd.f32 %v1851, %v1821
      %v1853 = vadd.f32 %v1852, %v1822
      %v1854 = vadd.f32 %v1853, %v1823
      %v1855 = vadd.f32 %v1854, %v1824
      %v1856 = vadd.f32 %v1855, %v1825
      %v1857 = vadd.f32 %v1856, %v1826
      %v1858 = vadd.f32 %v1857, %v1827
      %v1859 = vadd.f32 %v1858, %v1828
      %v1860 = vadd.f32 %v1859, %v1829
      %v1861 = vadd.f32 %v1860, %v1830
      %v1862 = vadd.f32 %v1861, %v1831
      %v1863 = vadd.f32 %v1862, %v1832
      %v1864 = vadd.f32 %v1863, %v1833
      %v1865 = vadd.f32 %v1864, %v1834
      %v1866 = vadd.f32 %v1865, %v1835
      %v1867 = vadd.f32 %v1866, %v1836
      %v1868 = vadd.f32 %v1867, %v1837
      %v1869 = vadd.f32 %v1868, %v1838
      %v1870 = vrot.slane %v1869, 4
      %v1871 = vadd.f32 %v1869, %v1870
      %v1872 = vrot.slane %v1871, 2
      %v1873 = vadd.f32 %v1871, %v1872
      %v1874 = vrot.slane %v1873, 1
      %v1875 = vadd.f32 %v1873, %v1874
      %1876 = vst [vmem:[%s271] sm:$0x1] %v1875
      %p1877 = scmp.lt.s32.totalorder %s17, 3
      %s1878 = scalar_select %p1877, %s17, 3
      %s1879 = scalar_lea.vmem %s6, %s1878
      // Predicated region
      $region45: #{model_forward_pallas.1} parent=43 // pred_check
        %p1880 = pneg %p171
      $region46: #{model_forward_pallas.1} parent=43 // pred_check_branch
        %1882 = sbr.rel (%p1880) target = $region48
      $region47: #{model_forward_pallas.1} parent=43 // pred_region
        _
      $region48: #{model_forward_pallas.1} parent=43 // pred_fallthru
        _
    $region44: #{model_forward_pallas.1} parent=5 // pred_fallthru
      _
    %p1883 = scmp.le.s32.totalorder 2, %s12
    // Predicated region
    $region49: #{model_forward_pallas.1} parent=5 // pred_check
      %p1884 = pneg %p1883
    $region50: #{model_forward_pallas.1} parent=5 // pred_check_branch
      %1886 = sbr.rel (%p1884) target = $region52
    $region51: #{model_forward_pallas.1} parent=5 // pred_region
      %s1887 = ssub.s32 %s12, 2
      // Predicated region
      $region53: #{model_forward_pallas.1} parent=51 // pred_check
        %p1888 = pneg %p177
      $region54: #{model_forward_pallas.1} parent=51 // pred_check_branch
        %1890 = sbr.rel (%p1888) target = $region56
      $region55: #{model_forward_pallas.1} parent=51 // pred_region
        %p1891 = scmp.lt.s32.totalorder %s18, 3
        %s1892 = scalar_select %p1891, %s18, 3
        %s1893 = scalar_lea.vmem %s6, %s1892
      $region56: #{model_forward_pallas.1} parent=51 // pred_fallthru
        _
    $region52: #{model_forward_pallas.1} parent=5 // pred_fallthru
      _
  $region6: #{model_forward_pallas.1} parent=0 // loop_footer
    %s16 = sadd.s32 1, %s12
  $region7: #{model_forward_pallas.1} parent=0 // loop_footer_branch
    %11 = sbr.rel target = $region3
  $region8: #{model_forward_pallas.1} parent=0 // loop_exit
    _

</llo_original>
